<compile_context>
chip_gen: v5e
topology: v5e:2x2
jax: 0.10.0
libtpu: 0.0.40
codegen_flags: <defaults>
</compile_context>

<pallas_src>
import functools

import jax
import jax.numpy as jnp
import numpy as np
from jax.experimental import pallas as pl
from jax.experimental.pallas import tpu as pltpu


# -----------------------------------------------------------------------------
# Kernel 1: phase-folded transposed conv. One matmul per (batch, h-tile) block;
# the patch is built in-kernel from shifted slices of the resident padded input.
# -----------------------------------------------------------------------------
def _convt_kernel(x_ref, w_ref, y_ref, stats_ref, *, th, W, Se):
    # x_ref:     (1, Hp, Wp, Cin)     bf16  padded input, resident per batch item
    # w_ref:     (Se*Se*Cin, P*Cout)  bf16  phase-folded weight
    # y_ref:     (1, th*W, P*Cout)    bf16  conv output tile (phase-major lanes)
    # stats_ref: (1, 1, 1, 2*P*Cout)  f32   [sum | sum of squares] partials for BN
    hb = pl.program_id(1)
    row0 = hb * th

    taps = []
    for dh in range(Se):
        for dw in range(Se):
            taps.append(x_ref[0, pl.ds(row0 + dh, th), pl.ds(dw, W), :])  # (th, W, Cin)
    patch = jnp.concatenate(taps, axis=-1)            # (th, W, Se*Se*Cin)
    patch = patch.reshape(th * W, patch.shape[-1])    # (th*W, Se*Se*Cin)

    y = jnp.dot(patch, w_ref[...], preferred_element_type=jnp.float32)  # (th*W, P*Cout) f32
    y_ref[...] = y.astype(y_ref.dtype).reshape(y_ref.shape)

    s0 = jnp.sum(y, axis=0, keepdims=True)            # (1, P*Cout)
    s1 = jnp.sum(y * y, axis=0, keepdims=True)        # (1, P*Cout)
    stats_ref[...] = jnp.concatenate([s0, s1], axis=-1).reshape(stats_ref.shape)


# -----------------------------------------------------------------------------
# Kernel 2: fused BatchNorm (precomputed per-channel scale/shift) + ReLU,
# applied phase-major (lane dim = s*s*Cout), bf16 in / bf16 out.
# -----------------------------------------------------------------------------
def _bn_relu_kernel(y_ref, scale_ref, shift_ref, o_ref):
    y = y_ref[...].astype(jnp.float32)
    o = jnp.maximum(y * scale_ref[...] + shift_ref[...], 0.0)
    o_ref[...] = o.astype(o_ref.dtype)


def _pick_h_block(H, per_row_bytes, budget_bytes):
    cap = max(budget_bytes // max(per_row_bytes, 1), 1)
    for cand in range(min(H, cap), 0, -1):
        if H % cand == 0:
            return cand
    return 1


def _pick_row_block(rows, per_row_bytes, budget_bytes):
    cap = max(budget_bytes // max(per_row_bytes, 1), 8)
    cand = min(rows, cap)
    cand -= cand % 8
    while cand >= 8:
        if rows % cand == 0:
            return cand
        cand -= 8
    return rows  # full-dim block (allowed by the (8,128) full-dim exception)


def conv_up_block(x_nchw, weight, gamma, beta, *, stride, padding, eps=1e-5):
    """weight uses the PyTorch ConvTranspose2d layout (Cin, Cout, K, K)."""
    N, Cin, H, W = x_nchw.shape
    Cin_w, Cout, K, K2 = weight.shape
    assert Cin == Cin_w and K == K2
    s, p = stride, padding
    Ho = (H - 1) * s - 2 * p + K
    Wo = (W - 1) * s - 2 * p + K

    # Polyphase fast path assumes the exact-upsample geometry (K = s + 2p, Ho = H*s).
    # TODO(synk): general kernel/stride/padding geometries need output crop/extend logic.
    assert K % s == 0, "polyphase path assumes kernel_size divisible by stride"
    assert Ho == H * s and Wo == W * s, "polyphase path assumes Ho == H*stride"

    E = K // s                      # taps per phase per spatial dim
    P = s * s                       # number of output phases
    Omax = (s - 1 + p) // s         # max per-phase input offset
    Se = E + Omax                   # superset taps per spatial dim (phase-folded)
    SSC = Se * Se * Cin             # folded contraction dim
    PC = P * Cout                   # phase-folded output channels (lane dim)

    # ---- glue: NCHW -> NHWC in bf16 once, pad for the superset taps ----
    x = jnp.transpose(x_nchw, (0, 2, 3, 1)).astype(jnp.bfloat16)       # (N, H, W, Cin)
    xp = jnp.pad(x, ((0, 0), (E - 1, Omax), (E - 1, Omax), (0, 0)))    # (N, Hp, Wp, Cin)
    Hp, Wp = H + E - 1 + Omax, W + E - 1 + Omax

    # ---- fold every phase into one (Se*Se*Cin, P*Cout) weight (zeros where unused) ----
    wf = weight.astype(jnp.float32)
    wfold = jnp.zeros((Se, Se, Cin, s, s, Cout), jnp.float32)
    for rh in range(s):
        mh, offh = (rh + p) % s, (rh + p) // s
        for rw in range(s):
            mw, offw = (rw + p) % s, (rw + p) // s
            for eh in range(E):
                dh = offh + (E - 1 - eh)
                for ew in range(E):
                    dw = offw + (E - 1 - ew)
                    wfold = wfold.at[dh, dw, :, rh, rw, :].set(
                        wf[:, :, mh + s * eh, mw + s * ew])
    wfold = wfold.reshape(SSC, PC).astype(jnp.bfloat16)

    # ---- conv tile size from a VMEM budget (keeps blocks well under v7x's 64 MiB) ----
    budget = 24 * 1024 * 1024
    per_row = W * (PC * (2 * 2 + 4) + SSC * 2)         # y bf16 x2 bufs + f32 acc + patch
    th = _pick_h_block(H, per_row, budget)
    HB = H // th
    resident = Hp * Wp * Cin * 2 * 2 + SSC * PC * 2 * 2
    vmem_conv = int(min(max(2 * (resident + th * per_row), 32 << 20), 48 << 20))

    # ---- Pallas kernel 1: phase-folded transposed conv, grid over (batch, h-tile) ----
    conv = pl.pallas_call(
        functools.partial(_convt_kernel, th=th, W=W, Se=Se),
        out_shape=(
            jax.ShapeDtypeStruct((N, H * W, PC), jnp.bfloat16),
            jax.ShapeDtypeStruct((N, HB, 1, 2 * PC), jnp.float32),
        ),
        grid_spec=pltpu.PrefetchScalarGridSpec(
            num_scalar_prefetch=0,
            grid=(N, HB),
            in_specs=[
                pl.BlockSpec((1, Hp, Wp, Cin), lambda n, hb: (n, 0, 0, 0)),
                pl.BlockSpec((SSC, PC), lambda n, hb: (0, 0)),
            ],
            out_specs=[
                pl.BlockSpec((1, th * W, PC), lambda n, hb: (n, hb, 0)),
                pl.BlockSpec((1, 1, 1, 2 * PC), lambda n, hb: (n, hb, 0, 0)),
            ],
        ),
        compiler_params=pltpu.CompilerParams(
            dimension_semantics=("parallel", "parallel"),
            vmem_limit_bytes=vmem_conv,
        ),
    )
    y_conv, stats = conv(xp, wfold)

    # ---- finalize BN batch stats (biased over N,Ho,Wo) from the tiny side outputs ----
    count = float(N * Ho * Wo)
    stats_sum = jnp.sum(stats, axis=(0, 1, 2))                       # (2*PC,)
    ssum = stats_sum[:PC].reshape(s, s, Cout).sum(axis=(0, 1))       # (Cout,)
    ssq = stats_sum[PC:].reshape(s, s, Cout).sum(axis=(0, 1))        # (Cout,)
    mean = ssum / count
    var = jnp.maximum(ssq / count - mean * mean, 0.0)
    # TODO(synk): E[y^2]-mean^2 in f32 can cancel for large-|mean| activations; a centered
    #             second accumulation pass would be safer for extreme distributions.
    inv = jax.lax.rsqrt(var + eps)
    scale = gamma.astype(jnp.float32) * inv
    shift = beta.astype(jnp.float32) - mean * scale
    # TODO(synk): running_mean/running_var momentum updates (stateful training bookkeeping)
    #             are not modeled; they do not affect this forward output.
    scale_row = jnp.tile(scale, P).reshape(1, PC)   # phase-major lane layout (rh, rw, co)
    shift_row = jnp.tile(shift, P).reshape(1, PC)

    # ---- Pallas kernel 2: phase-major fused scale/shift + ReLU, row-tiled grid ----
    rows = N * H * W
    y2d = y_conv.reshape(rows, PC)                  # free reshape (leading-dim merge)
    r_blk = _pick_row_block(rows, PC * (2 + 2) * 2, budget)
    vmem_bn = int(min(max(4 * r_blk * PC * (2 + 2), 32 << 20), 48 << 20))

    bn = pl.pallas_call(
        _bn_relu_kernel,
        out_shape=jax.ShapeDtypeStruct((rows, PC), jnp.bfloat16),
        grid_spec=pltpu.PrefetchScalarGridSpec(
            num_scalar_prefetch=0,
            grid=(rows // r_blk,),
            in_specs=[
                pl.BlockSpec((r_blk, PC), lambda i: (i, 0)),
                pl.BlockSpec((1, PC), lambda i: (0, 0)),
                pl.BlockSpec((1, PC), lambda i: (0, 0)),
            ],
            out_specs=pl.BlockSpec((r_blk, PC), lambda i: (i, 0)),
        ),
        compiler_params=pltpu.CompilerParams(
            dimension_semantics=("parallel",),
            vmem_limit_bytes=vmem_bn,
        ),
    )
    o2d = bn(y2d, scale_row, shift_row)

    # ---- single fused phase-scatter + NHWC->NCHW transpose, cast to f32 ----
    out = o2d.reshape(N, H, W, s, s, Cout)                    # (n, qh, qw, rh, rw, co)
    out = jnp.transpose(out, (0, 5, 1, 3, 2, 4))              # (n, co, qh, rh, qw, rw)
    out = out.reshape(N, Cout, Ho, Wo)
    return out.astype(jnp.float32)


def _reference(x_nchw, weight, gamma, beta, stride, padding, eps=1e-5):
    """Pure-JAX reference matching PyTorch ConvTranspose2d + BatchNorm2d(train) + ReLU."""
    K = weight.shape[2]
    rhs = jnp.transpose(jnp.flip(weight, (2, 3)), (1, 0, 2, 3))  # OIHW
    pad = K - 1 - padding
    y = jax.lax.conv_general_dilated(
        x_nchw, rhs, window_strides=(1, 1),
        padding=[(pad, pad), (pad, pad)],
        lhs_dilation=(stride, stride), rhs_dilation=(1, 1),
        dimension_numbers=("NCHW", "OIHW", "NCHW"),
        precision=jax.lax.Precision.HIGHEST)
    mean = jnp.mean(y, axis=(0, 2, 3), keepdims=True)
    var = jnp.mean((y - mean) ** 2, axis=(0, 2, 3), keepdims=True)
    yhat = (y - mean) * jax.lax.rsqrt(var + eps)
    out = yhat * gamma.reshape(1, -1, 1, 1) + beta.reshape(1, -1, 1, 1)
    return jnp.maximum(out, 0.0)


if __name__ == "__main__":
    key = jax.random.PRNGKey(0)
    k1, k2, k3, k4 = jax.random.split(key, 4)

    N, Cin, H, W = 2, 4, 16, 16
    Cout, K, stride, padding = 8, 4, 2, 1

    x = jax.random.normal(k1, (N, Cin, H, W), jnp.float32)
    weight = jax.random.normal(k2, (Cin, Cout, K, K), jnp.float32) * 0.1  # ConvTranspose2d
    gamma = 1.0 + 0.1 * jax.random.normal(k3, (Cout,), jnp.float32)       # BN affine weight
    beta = 0.1 * jax.random.normal(k4, (Cout,), jnp.float32)              # BN affine bias

    fn = jax.jit(functools.partial(conv_up_block, stride=stride, padding=padding))
    out = jax.block_until_ready(fn(x, weight, gamma, beta))

    Ho = (H - 1) * stride - 2 * padding + K
    assert out.shape == (N, Cout, Ho, Ho), out.shape

    ref = jax.block_until_ready(_reference(x, weight, gamma, beta, stride, padding))
    # bf16 input/weight/activation with f32 accumulation -> loosened tolerance vs f32 ref.
    np.testing.assert_allclose(np.asarray(out), np.asarray(ref), rtol=4e-2, atol=4e-2)

    print("KERNEL_OK")
</pallas_src>

<mosaic_0001>
module attributes {stable_mosaic.version = 11 : i64} {
  func.func @_convt_kernel(%arg0: i32, %arg1: i32, %arg2: memref<1x18x18x4xbf16, #tpu.memory_space<vmem>>, %arg3: memref<36x32xbf16, #tpu.memory_space<vmem>>, %arg4: memref<1x256x32xbf16, #tpu.memory_space<vmem>>, %arg5: memref<1x1x1x64xf32, #tpu.memory_space<vmem>>) attributes {dimension_semantics = [#tpu.dimension_semantics<parallel>, #tpu.dimension_semantics<parallel>], iteration_bounds = array<i64: 2, 1>, scalar_prefetch = 0 : i64, scratch_operands = 0 : i64, tpu.core_type = #tpu.core_type<tc>, window_params = [{transform_indices = @transform_0, window_bounds = array<i64: 1, 18, 18, 4>}, {pipeline_mode = #tpu.pipeline_mode<synchronous>, transform_indices = @transform_1, window_bounds = array<i64: 36, 32>}, {transform_indices = @transform_2, window_bounds = array<i64: 1, 256, 32>}, {transform_indices = @transform_3, window_bounds = array<i64: 1, 1, 1, 64>}]} {
    %c16_i32 = arith.constant 16 : i32
    %0 = arith.muli %arg1, %c16_i32 : i32
    %c0_i32 = arith.constant 0 : i32
    %1 = arith.addi %0, %c0_i32 : i32
    %c0 = arith.constant 0 : index
    %2 = arith.index_cast %1 : i32 to index
    %c0_0 = arith.constant 0 : index
    %c0_1 = arith.constant 0 : index
    %3 = vector.load %arg2[%c0, %2, %c0_0, %c0_1] : memref<1x18x18x4xbf16, #tpu.memory_space<vmem>>, vector<1x16x16x4xbf16>
    %4 = vector.shape_cast %3 : vector<1x16x16x4xbf16> to vector<16x16x4xbf16>
    %c0_i32_2 = arith.constant 0 : i32
    %5 = arith.addi %0, %c0_i32_2 : i32
    %c0_3 = arith.constant 0 : index
    %6 = arith.index_cast %5 : i32 to index
    %c1 = arith.constant 1 : index
    %c0_4 = arith.constant 0 : index
    %7 = vector.load %arg2[%c0_3, %6, %c1, %c0_4] : memref<1x18x18x4xbf16, #tpu.memory_space<vmem>>, vector<1x16x16x4xbf16>
    %8 = vector.shape_cast %7 : vector<1x16x16x4xbf16> to vector<16x16x4xbf16>
    %c0_i32_5 = arith.constant 0 : i32
    %9 = arith.addi %0, %c0_i32_5 : i32
    %c0_6 = arith.constant 0 : index
    %10 = arith.index_cast %9 : i32 to index
    %c2 = arith.constant 2 : index
    %c0_7 = arith.constant 0 : index
    %11 = vector.load %arg2[%c0_6, %10, %c2, %c0_7] : memref<1x18x18x4xbf16, #tpu.memory_space<vmem>>, vector<1x16x16x4xbf16>
    %12 = vector.shape_cast %11 : vector<1x16x16x4xbf16> to vector<16x16x4xbf16>
    %c1_i32 = arith.constant 1 : i32
    %13 = arith.addi %0, %c1_i32 : i32
    %c0_8 = arith.constant 0 : index
    %14 = arith.index_cast %13 : i32 to index
    %c0_9 = arith.constant 0 : index
    %c0_10 = arith.constant 0 : index
    %15 = vector.load %arg2[%c0_8, %14, %c0_9, %c0_10] : memref<1x18x18x4xbf16, #tpu.memory_space<vmem>>, vector<1x16x16x4xbf16>
    %16 = vector.shape_cast %15 : vector<1x16x16x4xbf16> to vector<16x16x4xbf16>
    %c1_i32_11 = arith.constant 1 : i32
    %17 = arith.addi %0, %c1_i32_11 : i32
    %c0_12 = arith.constant 0 : index
    %18 = arith.index_cast %17 : i32 to index
    %c1_13 = arith.constant 1 : index
    %c0_14 = arith.constant 0 : index
    %19 = vector.load %arg2[%c0_12, %18, %c1_13, %c0_14] : memref<1x18x18x4xbf16, #tpu.memory_space<vmem>>, vector<1x16x16x4xbf16>
    %20 = vector.shape_cast %19 : vector<1x16x16x4xbf16> to vector<16x16x4xbf16>
    %c1_i32_15 = arith.constant 1 : i32
    %21 = arith.addi %0, %c1_i32_15 : i32
    %c0_16 = arith.constant 0 : index
    %22 = arith.index_cast %21 : i32 to index
    %c2_17 = arith.constant 2 : index
    %c0_18 = arith.constant 0 : index
    %23 = vector.load %arg2[%c0_16, %22, %c2_17, %c0_18] : memref<1x18x18x4xbf16, #tpu.memory_space<vmem>>, vector<1x16x16x4xbf16>
    %24 = vector.shape_cast %23 : vector<1x16x16x4xbf16> to vector<16x16x4xbf16>
    %c2_i32 = arith.constant 2 : i32
    %25 = arith.addi %0, %c2_i32 : i32
    %c0_19 = arith.constant 0 : index
    %26 = arith.index_cast %25 : i32 to index
    %c0_20 = arith.constant 0 : index
    %c0_21 = arith.constant 0 : index
    %27 = vector.load %arg2[%c0_19, %26, %c0_20, %c0_21] : memref<1x18x18x4xbf16, #tpu.memory_space<vmem>>, vector<1x16x16x4xbf16>
    %28 = vector.shape_cast %27 : vector<1x16x16x4xbf16> to vector<16x16x4xbf16>
    %c2_i32_22 = arith.constant 2 : i32
    %29 = arith.addi %0, %c2_i32_22 : i32
    %c0_23 = arith.constant 0 : index
    %30 = arith.index_cast %29 : i32 to index
    %c1_24 = arith.constant 1 : index
    %c0_25 = arith.constant 0 : index
    %31 = vector.load %arg2[%c0_23, %30, %c1_24, %c0_25] : memref<1x18x18x4xbf16, #tpu.memory_space<vmem>>, vector<1x16x16x4xbf16>
    %32 = vector.shape_cast %31 : vector<1x16x16x4xbf16> to vector<16x16x4xbf16>
    %c2_i32_26 = arith.constant 2 : i32
    %33 = arith.addi %0, %c2_i32_26 : i32
    %c0_27 = arith.constant 0 : index
    %34 = arith.index_cast %33 : i32 to index
    %c2_28 = arith.constant 2 : index
    %c0_29 = arith.constant 0 : index
    %35 = vector.load %arg2[%c0_27, %34, %c2_28, %c0_29] : memref<1x18x18x4xbf16, #tpu.memory_space<vmem>>, vector<1x16x16x4xbf16>
    %36 = vector.shape_cast %35 : vector<1x16x16x4xbf16> to vector<16x16x4xbf16>
    %37 = tpu.concatenate %4, %8, %12, %16, %20, %24, %28, %32, %36 in 2 : vector<16x16x4xbf16>, vector<16x16x4xbf16>, vector<16x16x4xbf16>, vector<16x16x4xbf16>, vector<16x16x4xbf16>, vector<16x16x4xbf16>, vector<16x16x4xbf16>, vector<16x16x4xbf16>, vector<16x16x4xbf16> -> vector<16x16x36xbf16>
    %38 = vector.shape_cast %37 : vector<16x16x36xbf16> to vector<256x36xbf16>
    %c0_30 = arith.constant 0 : index
    %c0_31 = arith.constant 0 : index
    %39 = vector.load %arg3[%c0_30, %c0_31] : memref<36x32xbf16, #tpu.memory_space<vmem>>, vector<36x32xbf16>
    %cst = arith.constant dense<0.000000e+00> : vector<256x32xf32>
    %40 = tpu.matmul %38, %39, %cst {dimension_numbers = #tpu.dot_dimension_numbers<[1], [0], [0], [1], [0, 0, 1, 1], [], []>} : vector<256x36xbf16>, vector<36x32xbf16>, vector<256x32xf32> -> vector<256x32xf32>
    %41 = arith.truncf %40 : vector<256x32xf32> to vector<256x32xbf16>
    %42 = vector.shape_cast %41 : vector<256x32xbf16> to vector<1x256x32xbf16>
    %c0_32 = arith.constant 0 : index
    %c0_33 = arith.constant 0 : index
    %c0_34 = arith.constant 0 : index
    %43 = vector.load %arg4[%c0_32, %c0_33, %c0_34] : memref<1x256x32xbf16, #tpu.memory_space<vmem>>, vector<1x256x32xbf16>
    tpu.vector_store %arg4[%c0_32, %c0_33, %c0_34], %42 {strides = array<i32>} : memref<1x256x32xbf16, #tpu.memory_space<vmem>>, vector<1x256x32xbf16>,
    %cst_35 = arith.constant dense<0.000000e+00> : vector<32xf32>
    %44 = vector.multi_reduction <add>, %40, %cst_35 [0] : vector<256x32xf32> to vector<32xf32>
    %45 = vector.shape_cast %44 : vector<32xf32> to vector<1x32xf32>
    %46 = arith.mulf %40, %40 : vector<256x32xf32>
    %cst_36 = arith.constant dense<0.000000e+00> : vector<32xf32>
    %47 = vector.multi_reduction <add>, %46, %cst_36 [0] : vector<256x32xf32> to vector<32xf32>
    %48 = vector.shape_cast %47 : vector<32xf32> to vector<1x32xf32>
    %49 = tpu.concatenate %45, %48 in 1 : vector<1x32xf32>, vector<1x32xf32> -> vector<1x64xf32>
    %50 = vector.shape_cast %49 : vector<1x64xf32> to vector<1x1x1x64xf32>
    %c0_37 = arith.constant 0 : index
    %c0_38 = arith.constant 0 : index
    %c0_39 = arith.constant 0 : index
    %c0_40 = arith.constant 0 : index
    %51 = vector.load %arg5[%c0_37, %c0_38, %c0_39, %c0_40] : memref<1x1x1x64xf32, #tpu.memory_space<vmem>>, vector<1x1x1x64xf32>
    tpu.vector_store %arg5[%c0_37, %c0_38, %c0_39, %c0_40], %50 {strides = array<i32>} : memref<1x1x1x64xf32, #tpu.memory_space<vmem>>, vector<1x1x1x64xf32>,
    return
  }
  func.func @transform_0(%arg0: i32, %arg1: i32) -> (i32, i32, i32, i32) {
    %c0_i32 = arith.constant 0 : i32
    %c0_i32_0 = arith.constant 0 : i32
    %c0_i32_1 = arith.constant 0 : i32
    %c0_i32_2 = arith.constant 0 : i32
    return %arg0, %c0_i32, %c0_i32_0, %c0_i32_1 : i32, i32, i32, i32
  }
  func.func @transform_1(%arg0: i32, %arg1: i32) -> (i32, i32) {
    %c0_i32 = arith.constant 0 : i32
    %c0_i32_0 = arith.constant 0 : i32
    %c0_i32_1 = arith.constant 0 : i32
    return %c0_i32, %c0_i32_0 : i32, i32
  }
  func.func @transform_2(%arg0: i32, %arg1: i32) -> (i32, i32, i32) {
    %c0_i32 = arith.constant 0 : i32
    %c0_i32_0 = arith.constant 0 : i32
    return %arg0, %arg1, %c0_i32 : i32, i32, i32
  }
  func.func @transform_3(%arg0: i32, %arg1: i32) -> (i32, i32, i32, i32) {
    %c0_i32 = arith.constant 0 : i32
    %c0_i32_0 = arith.constant 0 : i32
    %c0_i32_1 = arith.constant 0 : i32
    return %arg0, %arg1, %c0_i32, %c0_i32_0 : i32, i32, i32, i32
  }
}

module attributes {stable_mosaic.version = 11 : i64} {
  func.func @_bn_relu_kernel(%arg0: i32, %arg1: memref<512x32xbf16, #tpu.memory_space<vmem>>, %arg2: memref<1x32xf32, #tpu.memory_space<vmem>>, %arg3: memref<1x32xf32, #tpu.memory_space<vmem>>, %arg4: memref<512x32xbf16, #tpu.memory_space<vmem>>) attributes {dimension_semantics = [#tpu.dimension_semantics<parallel>], iteration_bounds = array<i64: 1>, scalar_prefetch = 0 : i64, scratch_operands = 0 : i64, tpu.core_type = #tpu.core_type<tc>, window_params = [{transform_indices = @transform_0, window_bounds = array<i64: 512, 32>}, {pipeline_mode = #tpu.pipeline_mode<synchronous>, transform_indices = @transform_1, window_bounds = array<i64: 1, 32>}, {pipeline_mode = #tpu.pipeline_mode<synchronous>, transform_indices = @transform_2, window_bounds = array<i64: 1, 32>}, {transform_indices = @transform_3, window_bounds = array<i64: 512, 32>}]} {
    %c0 = arith.constant 0 : index
    %c0_0 = arith.constant 0 : index
    %0 = vector.load %arg1[%c0, %c0_0] : memref<512x32xbf16, #tpu.memory_space<vmem>>, vector<512x32xbf16>
    %1 = arith.extf %0 : vector<512x32xbf16> to vector<512x32xf32>
    %c0_1 = arith.constant 0 : index
    %c0_2 = arith.constant 0 : index
    %2 = vector.load %arg2[%c0_1, %c0_2] : memref<1x32xf32, #tpu.memory_space<vmem>>, vector<1x32xf32>
    %3 = vector.broadcast %2 : vector<1x32xf32> to vector<512x32xf32>
    %4 = arith.mulf %1, %3 : vector<512x32xf32>
    %c0_3 = arith.constant 0 : index
    %c0_4 = arith.constant 0 : index
    %5 = vector.load %arg3[%c0_3, %c0_4] : memref<1x32xf32, #tpu.memory_space<vmem>>, vector<1x32xf32>
    %6 = vector.broadcast %5 : vector<1x32xf32> to vector<512x32xf32>
    %7 = arith.addf %4, %6 : vector<512x32xf32>
    %cst = arith.constant 0.000000e+00 : f32
    %8 = vector.broadcast %cst : f32 to vector<512x32xf32>
    %9 = arith.maximumf %7, %8 : vector<512x32xf32>
    %10 = arith.truncf %9 : vector<512x32xf32> to vector<512x32xbf16>
    %c0_5 = arith.constant 0 : index
    %c0_6 = arith.constant 0 : index
    %11 = vector.load %arg4[%c0_5, %c0_6] : memref<512x32xbf16, #tpu.memory_space<vmem>>, vector<512x32xbf16>
    tpu.vector_store %arg4[%c0_5, %c0_6], %10 {strides = array<i32>} : memref<512x32xbf16, #tpu.memory_space<vmem>>, vector<512x32xbf16>,
    return
  }
  func.func @transform_0(%arg0: i32) -> (i32, i32) {
    %c0_i32 = arith.constant 0 : i32
    %c0_i32_0 = arith.constant 0 : i32
    return %arg0, %c0_i32 : i32, i32
  }
  func.func @transform_1(%arg0: i32) -> (i32, i32) {
    %c0_i32 = arith.constant 0 : i32
    %c0_i32_0 = arith.constant 0 : i32
    %c0_i32_1 = arith.constant 0 : i32
    return %c0_i32, %c0_i32_0 : i32, i32
  }
  func.func @transform_2(%arg0: i32) -> (i32, i32) {
    %c0_i32 = arith.constant 0 : i32
    %c0_i32_0 = arith.constant 0 : i32
    %c0_i32_1 = arith.constant 0 : i32
    return %c0_i32, %c0_i32_0 : i32, i32
  }
  func.func @transform_3(%arg0: i32) -> (i32, i32) {
    %c0_i32 = arith.constant 0 : i32
    %c0_i32_0 = arith.constant 0 : i32
    return %arg0, %c0_i32 : i32, i32
  }
}

</mosaic_0001>

<llo_original>
// kernel: tile.18
$region0: #{tile.18}
  #allocation0 [shape = 's32[1]{0}', space=sflag, size = 0x4, scoped, tag = 'scoped memory for tile.18']
  %s0 = inlined_call_operand.vmem [shape: f32[8], index: 0, kind: input, shape index: {}]
  %s1 = inlined_call_operand.vmem [shape: f32[4,8], index: 1, kind: output, shape index: {}]
  // Predicated region
  $region2: #{tile.18} parent=0 // pred_check
    _
  $region3: #{tile.18} parent=0 // pred_check_branch
    %3 = sbr.rel (0) target = $region5
  $region4: #{tile.18} parent=0 // pred_region
    _
  $region5: #{tile.18} parent=0 // pred_fallthru
    _
  %v4 = vld [vmem:[%s0] ss:$0 sm:$0xff]
  %5 = vst [vmem:[%s1] sm:$0xf] %v4

// kernel: tile.19
$region0: #{tile.19}
  %s0 = inlined_call_operand.vmem [shape: f32[4,8], index: 0, kind: input, shape index: {}]
  %s1 = inlined_call_operand.vmem [shape: f32[1,32], index: 1, kind: output, shape index: {}]
  $region1: #{tile.19} parent=0
    #allocation0 [shape = 'u8[4096]{0}', space=vmem, size = 0x1000, scoped, tag = 'scoped mem for output reshape']
    #allocation1 [shape = 'u8[4096]{0}', space=vmem, size = 0x1000, scoped, tag = 'scoped mem for input reshape']
    %s3 = ssub.s32 16, 1
    %v4 = vld [vmem:[%s0] sm:%s3]
    %5 = vst [vmem:[#allocation1] sm:%s3] %v4
    %v6 = vld [vmem:[#allocation1] sm:$0x1]
    %vm7 = vcmask 64512
    %8 = vst.msk [vmem:[#allocation0] sm:$0x1] %vm7, %v6
    %s9 = scalar_lea.vmem [#allocation1], 3
    %v10 = vld [vmem:[%s9] sm:$0x1]
    %11 = vrot.lane.b32.xlu0 %v10, 24
    %v12 = vpop.permute.xlu0 %11
    %vm13 = vcmask 261312
    %14 = vst.msk [vmem:[#allocation0] sm:$0x1] %vm13, %v12
    %s15 = scalar_lea.vmem [#allocation1], 2
    %v16 = vld [vmem:[%s15] sm:$0x1]
    %17 = vrot.lane.b32.xlu0 %v16, 16
    %v18 = vpop.permute.xlu0 %17
    %vm19 = vcmask 195712
    %20 = vst.msk [vmem:[#allocation0] sm:$0x1] %vm19, %v18
    %s21 = scalar_lea.vmem [#allocation1], 1
    %v22 = vld [vmem:[%s21] sm:$0x1]
    %23 = vrot.lane.b32.xlu0 %v22, 8
    %v24 = vpop.permute.xlu0 %23
    %vm25 = vcmask 130112
    %26 = vst.msk [vmem:[#allocation0] sm:$0x1] %vm25, %v24
    %s28 = ssub.s32 2, 1
    %v29 = vld [vmem:[#allocation0] sm:%s28]
    %s31 = ssub.s32 2, 1
    %32 = vst [vmem:[%s1] sm:%s31] %v29

// kernel: conv_up_block.3
$region0: #{conv_up_block.3}
  #allocation0 [shape = 'u32[]', space=smem, size = 0x4, offset = 0x4, fixed_abs, tag = 'smem constant byte address 0x4 - core index']
  #allocation1 [shape = 'u32[72,128]{1,0:T(1,128)}', space=vmem, size = 0x9000, scoped, tag = 'internal scratch']
  %s0 = inlined_call_operand.vmem [shape: bf16[512,32], index: 0, kind: input, shape index: {}]
  %s1 = inlined_call_operand.vmem [shape: f32[1,32], index: 1, kind: input, shape index: {}]
  %s2 = inlined_call_operand.vmem [shape: f32[1,32], index: 2, kind: input, shape index: {}]
  %s3 = inlined_call_operand.vmem [shape: bf16[512,32], index: 3, kind: output, shape index: {}]
  %s4 = sld [smem:[#allocation0]]
  $region22: #{conv_up_block.3} parent=0
    _
  %s6 = ssub.s32 1, %s4
  %s7 = scalar_select 0, %s6, %s4
  // Predicated region
  $region2: #{conv_up_block.3} parent=0 // pred_check
    _
  $region3: #{conv_up_block.3} parent=0 // pred_check_branch
    %9 = sbr.rel (0) target = $region5
  $region4: #{conv_up_block.3} parent=0 // pred_region
    _
  $region5: #{conv_up_block.3} parent=0 // pred_fallthru
    _
  // Predicated region
  $region6: #{conv_up_block.3} parent=0 // pred_check
    _
  $region7: #{conv_up_block.3} parent=0 // pred_check_branch
    %11 = sbr.rel (0) target = $region9
  $region8: #{conv_up_block.3} parent=0 // pred_region
    _
  $region9: #{conv_up_block.3} parent=0 // pred_fallthru
    _
  // Predicated region
  $region10: #{conv_up_block.3} parent=0 // pred_check
    _
  $region11: #{conv_up_block.3} parent=0 // pred_check_branch
    %13 = sbr.rel (0) target = $region13
  $region12: #{conv_up_block.3} parent=0 // pred_region
    _
  $region13: #{conv_up_block.3} parent=0 // pred_fallthru
    _
  %v14 = vld [vmem:[%s0] sm:$0xf]
  %v15 = vld [vmem:[%s0 + $0x4] sm:$0xf]
  %v16 = vld [vmem:[%s0 + $0x8] sm:$0xf]
  %v17 = vld [vmem:[%s0 + $0xc] sm:$0xf]
  %v18 = vld [vmem:[%s0 + $0x10] sm:$0xf]
  %v19 = vld [vmem:[%s0 + $0x14] sm:$0xf]
  %v20 = vld [vmem:[%s0 + $0x18] sm:$0xf]
  %v21 = vld [vmem:[%s0 + $0x1c] sm:$0xf]
  %v22 = vld [vmem:[%s0 + $0x20] sm:$0xf]
  %v23 = vld [vmem:[%s0 + $0x24] sm:$0xf]
  %v24 = vld [vmem:[%s0 + $0x28] sm:$0xf]
  %v25 = vld [vmem:[%s0 + $0x2c] sm:$0xf]
  %v26 = vld [vmem:[%s0 + $0x30] sm:$0xf]
  %v27 = vld [vmem:[%s0 + $0x34] sm:$0xf]
  %v28 = vld [vmem:[%s0 + $0x38] sm:$0xf]
  %v29 = vld [vmem:[%s0 + $0x3c] sm:$0xf]
  %v30 = vld [vmem:[%s0 + $0x40] sm:$0xf]
  %v31 = vld [vmem:[%s0 + $0x44] sm:$0xf]
  %v32 = vld [vmem:[%s0 + $0x48] sm:$0xf]
  %v33 = vld [vmem:[%s0 + $0x4c] sm:$0xf]
  %v34 = vld [vmem:[%s0 + $0x50] sm:$0xf]
  %v35 = vld [vmem:[%s0 + $0x54] sm:$0xf]
  %v36 = vld [vmem:[%s0 + $0x58] sm:$0xf]
  %v37 = vld [vmem:[%s0 + $0x5c] sm:$0xf]
  %v38 = vld [vmem:[%s0 + $0x60] sm:$0xf]
  %v39 = vld [vmem:[%s0 + $0x64] sm:$0xf]
  %v40 = vld [vmem:[%s0 + $0x68] sm:$0xf]
  %v41 = vld [vmem:[%s0 + $0x6c] sm:$0xf]
  %v42 = vld [vmem:[%s0 + $0x70] sm:$0xf]
  %v43 = vld [vmem:[%s0 + $0x74] sm:$0xf]
  %v44 = vld [vmem:[%s0 + $0x78] sm:$0xf]
  %v45 = vld [vmem:[%s0 + $0x7c] sm:$0xf]
  %v46 = vld [vmem:[%s0 + $0x80] sm:$0xf]
  %v47 = vld [vmem:[%s0 + $0x84] sm:$0xf]
  %v48 = vld [vmem:[%s0 + $0x88] sm:$0xf]
  %v49 = vld [vmem:[%s0 + $0x8c] sm:$0xf]
  %v50 = vld [vmem:[%s0 + $0x90] sm:$0xf]
  %v51 = vld [vmem:[%s0 + $0x94] sm:$0xf]
  %v52 = vld [vmem:[%s0 + $0x98] sm:$0xf]
  %v53 = vld [vmem:[%s0 + $0x9c] sm:$0xf]
  %v54 = vld [vmem:[%s0 + $0xa0] sm:$0xf]
  %v55 = vld [vmem:[%s0 + $0xa4] sm:$0xf]
  %v56 = vld [vmem:[%s0 + $0xa8] sm:$0xf]
  %v57 = vld [vmem:[%s0 + $0xac] sm:$0xf]
  %v58 = vld [vmem:[%s0 + $0xb0] sm:$0xf]
  %v59 = vld [vmem:[%s0 + $0xb4] sm:$0xf]
  %v60 = vld [vmem:[%s0 + $0xb8] sm:$0xf]
  %v61 = vld [vmem:[%s0 + $0xbc] sm:$0xf]
  %v62 = vld [vmem:[%s0 + $0xc0] sm:$0xf]
  %v63 = vld [vmem:[%s0 + $0xc4] sm:$0xf]
  %v64 = vld [vmem:[%s0 + $0xc8] sm:$0xf]
  %v65 = vld [vmem:[%s0 + $0xcc] sm:$0xf]
  %v66 = vld [vmem:[%s0 + $0xd0] sm:$0xf]
  %v67 = vld [vmem:[%s0 + $0xd4] sm:$0xf]
  %v68 = vld [vmem:[%s0 + $0xd8] sm:$0xf]
  %v69 = vld [vmem:[%s0 + $0xdc] sm:$0xf]
  %v70 = vld [vmem:[%s0 + $0xe0] sm:$0xf]
  %v71 = vld [vmem:[%s0 + $0xe4] sm:$0xf]
  %v72 = vld [vmem:[%s0 + $0xe8] sm:$0xf]
  %v73 = vld [vmem:[%s0 + $0xec] sm:$0xf]
  %v74 = vld [vmem:[%s0 + $0xf0] sm:$0xf]
  %v75 = vld [vmem:[%s0 + $0xf4] sm:$0xf]
  %v76 = vld [vmem:[%s0 + $0xf8] sm:$0xf]
  %v77 = vld [vmem:[%s0 + $0xfc] sm:$0xf]
  %v78 = vunpack.c.l.bf16 %v14
  %v79 = vunpack.c.l.bf16 %v15
  %v80 = vunpack.c.l.bf16 %v16
  %v81 = vunpack.c.l.bf16 %v17
  %v82 = vunpack.c.l.bf16 %v18
  %v83 = vunpack.c.l.bf16 %v19
  %v84 = vunpack.c.l.bf16 %v20
  %v85 = vunpack.c.l.bf16 %v21
  %v86 = vunpack.c.l.bf16 %v22
  %v87 = vunpack.c.l.bf16 %v23
  %v88 = vunpack.c.l.bf16 %v24
  %v89 = vunpack.c.l.bf16 %v25
  %v90 = vunpack.c.l.bf16 %v26
  %v91 = vunpack.c.l.bf16 %v27
  %v92 = vunpack.c.l.bf16 %v28
  %v93 = vunpack.c.l.bf16 %v29
  %v94 = vunpack.c.l.bf16 %v30
  %v95 = vunpack.c.l.bf16 %v31
  %v96 = vunpack.c.l.bf16 %v32
  %v97 = vunpack.c.l.bf16 %v33
  %v98 = vunpack.c.l.bf16 %v34
  %v99 = vunpack.c.l.bf16 %v35
  %v100 = vunpack.c.l.bf16 %v36
  %v101 = vunpack.c.l.bf16 %v37
  %v102 = vunpack.c.l.bf16 %v38
  %v103 = vunpack.c.l.bf16 %v39
  %v104 = vunpack.c.l.bf16 %v40
  %v105 = vunpack.c.l.bf16 %v41
  %v106 = vunpack.c.l.bf16 %v42
  %v107 = vunpack.c.l.bf16 %v43
  %v108 = vunpack.c.l.bf16 %v44
  %v109 = vunpack.c.l.bf16 %v45
  %v110 = vunpack.c.l.bf16 %v46
  %v111 = vunpack.c.l.bf16 %v47
  %v112 = vunpack.c.l.bf16 %v48
  %v113 = vunpack.c.l.bf16 %v49
  %v114 = vunpack.c.l.bf16 %v50
  %v115 = vunpack.c.l.bf16 %v51
  %v116 = vunpack.c.l.bf16 %v52
  %v117 = vunpack.c.l.bf16 %v53
  %v118 = vunpack.c.l.bf16 %v54
  %v119 = vunpack.c.l.bf16 %v55
  %v120 = vunpack.c.l.bf16 %v56
  %v121 = vunpack.c.l.bf16 %v57
  %v122 = vunpack.c.l.bf16 %v58
  %v123 = vunpack.c.l.bf16 %v59
  %v124 = vunpack.c.l.bf16 %v60
  %v125 = vunpack.c.l.bf16 %v61
  %v126 = vunpack.c.l.bf16 %v62
  %v127 = vunpack.c.l.bf16 %v63
  %v128 = vunpack.c.l.bf16 %v64
  %v129 = vunpack.c.l.bf16 %v65
  %v130 = vunpack.c.l.bf16 %v66
  %v131 = vunpack.c.l.bf16 %v67
  %v132 = vunpack.c.l.bf16 %v68
  %v133 = vunpack.c.l.bf16 %v69
  %v134 = vunpack.c.l.bf16 %v70
  %v135 = vunpack.c.l.bf16 %v71
  %v136 = vunpack.c.l.bf16 %v72
  %v137 = vunpack.c.l.bf16 %v73
  %v138 = vunpack.c.l.bf16 %v74
  %v139 = vunpack.c.l.bf16 %v75
  %v140 = vunpack.c.l.bf16 %v76
  %v141 = vunpack.c.l.bf16 %v77
  %v142 = vld [vmem:[%s1] sm:$0x1]
  %v144 = vperm.slane %v142, 0
  %v146 = vmul.f32 %v78, %v144
  %v147 = vmul.f32 %v79, %v144
  %v148 = vmul.f32 %v80, %v144
  %v149 = vmul.f32 %v81, %v144
  %v150 = vmul.f32 %v82, %v144
  %v151 = vmul.f32 %v83, %v144
  %v152 = vmul.f32 %v84, %v144
  %v153 = vmul.f32 %v85, %v144
  %v154 = vmul.f32 %v86, %v144
  %v155 = vmul.f32 %v87, %v144
  %v156 = vmul.f32 %v88, %v144
  %v157 = vmul.f32 %v89, %v144
  %v158 = vmul.f32 %v90, %v144
  %v159 = vmul.f32 %v91, %v144
  %v160 = vmul.f32 %v92, %v144
  %v161 = vmul.f32 %v93, %v144
  %v162 = vmul.f32 %v94, %v144
  %v163 = vmul.f32 %v95, %v144
  %v164 = vmul.f32 %v96, %v144
  %v165 = vmul.f32 %v97, %v144
  %v166 = vmul.f32 %v98, %v144
  %v167 = vmul.f32 %v99, %v144
  %v168 = vmul.f32 %v100, %v144
  %v169 = vmul.f32 %v101, %v144
  %v170 = vmul.f32 %v102, %v144
  %v171 = vmul.f32 %v103, %v144
  %v172 = vmul.f32 %v104, %v144
  %v173 = vmul.f32 %v105, %v144
  %v174 = vmul.f32 %v106, %v144
  %v175 = vmul.f32 %v107, %v144
  %v176 = vmul.f32 %v108, %v144
  %v177 = vmul.f32 %v109, %v144
  %v178 = vmul.f32 %v110, %v144
  %v179 = vmul.f32 %v111, %v144
  %v180 = vmul.f32 %v112, %v144
  %v181 = vmul.f32 %v113, %v144
  %v182 = vmul.f32 %v114, %v144
  %v183 = vmul.f32 %v115, %v144
  %v184 = vmul.f32 %v116, %v144
  %v185 = vmul.f32 %v117, %v144
  %v186 = vmul.f32 %v118, %v144
  %v187 = vmul.f32 %v119, %v144
  %v188 = vmul.f32 %v120, %v144
  %v189 = vmul.f32 %v121, %v144
  %v190 = vmul.f32 %v122, %v144
  %v191 = vmul.f32 %v123, %v144
  %v192 = vmul.f32 %v124, %v144
  %v193 = vmul.f32 %v125, %v144
  %v194 = vmul.f32 %v126, %v144
  %v195 = vmul.f32 %v127, %v144
  %v196 = vmul.f32 %v128, %v144
  %v197 = vmul.f32 %v129, %v144
  %v198 = vmul.f32 %v130, %v144
  %v199 = vmul.f32 %v131, %v144
  %v200 = vmul.f32 %v132, %v144
  %v201 = vmul.f32 %v133, %v144
  %v202 = vmul.f32 %v134, %v144
  %v203 = vmul.f32 %v135, %v144
  %v204 = vmul.f32 %v136, %v144
  %v205 = vmul.f32 %v137, %v144
  %v206 = vmul.f32 %v138, %v144
  %v207 = vmul.f32 %v139, %v144
  %v208 = vmul.f32 %v140, %v144
  %v209 = vmul.f32 %v141, %v144
  %v210 = vld [vmem:[%s2] sm:$0x1]
  %v212 = vperm.slane %v210, 0
  %v214 = vadd.f32 %v146, %v212
  %v215 = vadd.f32 %v147, %v212
  %v216 = vadd.f32 %v148, %v212
  %v217 = vadd.f32 %v149, %v212
  %v218 = vadd.f32 %v150, %v212
  %v219 = vadd.f32 %v151, %v212
  %v220 = vadd.f32 %v152, %v212
  %v221 = vadd.f32 %v153, %v212
  %v222 = vadd.f32 %v154, %v212
  %v223 = vadd.f32 %v155, %v212
  %v224 = vadd.f32 %v156, %v212
  %v225 = vadd.f32 %v157, %v212
  %v226 = vadd.f32 %v158, %v212
  %v227 = vadd.f32 %v159, %v212
  %v228 = vadd.f32 %v160, %v212
  %v229 = vadd.f32 %v161, %v212
  %v230 = vadd.f32 %v162, %v212
  %v231 = vadd.f32 %v163, %v212
  %v232 = vadd.f32 %v164, %v212
  %v233 = vadd.f32 %v165, %v212
  %v234 = vadd.f32 %v166, %v212
  %v235 = vadd.f32 %v167, %v212
  %v236 = vadd.f32 %v168, %v212
  %v237 = vadd.f32 %v169, %v212
  %v238 = vadd.f32 %v170, %v212
  %v239 = vadd.f32 %v171, %v212
  %v240 = vadd.f32 %v172, %v212
  %v241 = vadd.f32 %v173, %v212
  %v242 = vadd.f32 %v174, %v212
  %v243 = vadd.f32 %v175, %v212
  %v244 = vadd.f32 %v176, %v212
  %v245 = vadd.f32 %v177, %v212
  %v246 = vadd.f32 %v178, %v212
  %v247 = vadd.f32 %v179, %v212
  %v248 = vadd.f32 %v180, %v212
  %v249 = vadd.f32 %v181, %v212
  %v250 = vadd.f32 %v182, %v212
  %v251 = vadd.f32 %v183, %v212
  %v252 = vadd.f32 %v184, %v212
  %v253 = vadd.f32 %v185, %v212
  %v254 = vadd.f32 %v186, %v212
  %v255 = vadd.f32 %v187, %v212
  %v256 = vadd.f32 %v188, %v212
  %v257 = vadd.f32 %v189, %v212
  %v258 = vadd.f32 %v190, %v212
  %v259 = vadd.f32 %v191, %v212
  %v260 = vadd.f32 %v192, %v212
  %v261 = vadd.f32 %v193, %v212
  %v262 = vadd.f32 %v194, %v212
  %v263 = vadd.f32 %v195, %v212
  %v264 = vadd.f32 %v196, %v212
  %v265 = vadd.f32 %v197, %v212
  %v266 = vadd.f32 %v198, %v212
  %v267 = vadd.f32 %v199, %v212
  %v268 = vadd.f32 %v200, %v212
  %v269 = vadd.f32 %v201, %v212
  %v270 = vadd.f32 %v202, %v212
  %v271 = vadd.f32 %v203, %v212
  %v272 = vadd.f32 %v204, %v212
  %v273 = vadd.f32 %v205, %v212
  %v274 = vadd.f32 %v206, %v212
  %v275 = vadd.f32 %v207, %v212
  %v276 = vadd.f32 %v208, %v212
  %v277 = vadd.f32 %v209, %v212
  %v278 = vmax.f32 %v214, 0.0
  %v279 = vmax.f32 %v215, 0.0
  %v280 = vmax.f32 %v216, 0.0
  %v281 = vmax.f32 %v217, 0.0
  %v282 = vmax.f32 %v218, 0.0
  %v283 = vmax.f32 %v219, 0.0
  %v284 = vmax.f32 %v220, 0.0
  %v285 = vmax.f32 %v221, 0.0
  %v286 = vmax.f32 %v222, 0.0
  %v287 = vmax.f32 %v223, 0.0
  %v288 = vmax.f32 %v224, 0.0
  %v289 = vmax.f32 %v225, 0.0
  %v290 = vmax.f32 %v226, 0.0
  %v291 = vmax.f32 %v227, 0.0
  %v292 = vmax.f32 %v228, 0.0
  %v293 = vmax.f32 %v229, 0.0
  %v294 = vmax.f32 %v230, 0.0
  %v295 = vmax.f32 %v231, 0.0
  %v296 = vmax.f32 %v232, 0.0
  %v297 = vmax.f32 %v233, 0.0
  %v298 = vmax.f32 %v234, 0.0
  %v299 = vmax.f32 %v235, 0.0
  %v300 = vmax.f32 %v236, 0.0
  %v301 = vmax.f32 %v237, 0.0
  %v302 = vmax.f32 %v238, 0.0
  %v303 = vmax.f32 %v239, 0.0
  %v304 = vmax.f32 %v240, 0.0
  %v305 = vmax.f32 %v241, 0.0
  %v306 = vmax.f32 %v242, 0.0
  %v307 = vmax.f32 %v243, 0.0
  %v308 = vmax.f32 %v244, 0.0
  %v309 = vmax.f32 %v245, 0.0
  %v310 = vmax.f32 %v246, 0.0
  %v311 = vmax.f32 %v247, 0.0
  %v312 = vmax.f32 %v248, 0.0
  %v313 = vmax.f32 %v249, 0.0
  %v314 = vmax.f32 %v250, 0.0
  %v315 = vmax.f32 %v251, 0.0
  %v316 = vmax.f32 %v252, 0.0
  %v317 = vmax.f32 %v253, 0.0
  %v318 = vmax.f32 %v254, 0.0
  %v319 = vmax.f32 %v255, 0.0
  %v320 = vmax.f32 %v256, 0.0
  %v321 = vmax.f32 %v257, 0.0
  %v322 = vmax.f32 %v258, 0.0
  %v323 = vmax.f32 %v259, 0.0
  %v324 = vmax.f32 %v260, 0.0
  %v325 = vmax.f32 %v261, 0.0
  %v326 = vmax.f32 %v262, 0.0
  %v327 = vmax.f32 %v263, 0.0
  %v328 = vmax.f32 %v264, 0.0
  %v329 = vmax.f32 %v265, 0.0
  %v330 = vmax.f32 %v266, 0.0
  %v331 = vmax.f32 %v267, 0.0
  %v332 = vmax.f32 %v268, 0.0
  %v333 = vmax.f32 %v269, 0.0
  %v334 = vmax.f32 %v270, 0.0
  %v335 = vmax.f32 %v271, 0.0
  %v336 = vmax.f32 %v272, 0.0
  %v337 = vmax.f32 %v273, 0.0
  %v338 = vmax.f32 %v274, 0.0
  %v339 = vmax.f32 %v275, 0.0
  %v340 = vmax.f32 %v276, 0.0
  %v341 = vmax.f32 %v277, 0.0
  %v342 = vpack.c.bf16 %v278, %v278
  %v343 = vpack.c.bf16 %v279, %v279
  %v344 = vpack.c.bf16 %v280, %v280
  %v345 = vpack.c.bf16 %v281, %v281
  %v346 = vpack.c.bf16 %v282, %v282
  %v347 = vpack.c.bf16 %v283, %v283
  %v348 = vpack.c.bf16 %v284, %v284
  %v349 = vpack.c.bf16 %v285, %v285
  %v350 = vpack.c.bf16 %v286, %v286
  %v351 = vpack.c.bf16 %v287, %v287
  %v352 = vpack.c.bf16 %v288, %v288
  %v353 = vpack.c.bf16 %v289, %v289
  %v354 = vpack.c.bf16 %v290, %v290
  %v355 = vpack.c.bf16 %v291, %v291
  %v356 = vpack.c.bf16 %v292, %v292
  %v357 = vpack.c.bf16 %v293, %v293
  %v358 = vpack.c.bf16 %v294, %v294
  %v359 = vpack.c.bf16 %v295, %v295
  %v360 = vpack.c.bf16 %v296, %v296
  %v361 = vpack.c.bf16 %v297, %v297
  %v362 = vpack.c.bf16 %v298, %v298
  %v363 = vpack.c.bf16 %v299, %v299
  %v364 = vpack.c.bf16 %v300, %v300
  %v365 = vpack.c.bf16 %v301, %v301
  %v366 = vpack.c.bf16 %v302, %v302
  %v367 = vpack.c.bf16 %v303, %v303
  %v368 = vpack.c.bf16 %v304, %v304
  %v369 = vpack.c.bf16 %v305, %v305
  %v370 = vpack.c.bf16 %v306, %v306
  %v371 = vpack.c.bf16 %v307, %v307
  %v372 = vpack.c.bf16 %v308, %v308
  %v373 = vpack.c.bf16 %v309, %v309
  %v374 = vpack.c.bf16 %v310, %v310
  %v375 = vpack.c.bf16 %v311, %v311
  %v376 = vpack.c.bf16 %v312, %v312
  %v377 = vpack.c.bf16 %v313, %v313
  %v378 = vpack.c.bf16 %v314, %v314
  %v379 = vpack.c.bf16 %v315, %v315
  %v380 = vpack.c.bf16 %v316, %v316
  %v381 = vpack.c.bf16 %v317, %v317
  %v382 = vpack.c.bf16 %v318, %v318
  %v383 = vpack.c.bf16 %v319, %v319
  %v384 = vpack.c.bf16 %v320, %v320
  %v385 = vpack.c.bf16 %v321, %v321
  %v386 = vpack.c.bf16 %v322, %v322
  %v387 = vpack.c.bf16 %v323, %v323
  %v388 = vpack.c.bf16 %v324, %v324
  %v389 = vpack.c.bf16 %v325, %v325
  %v390 = vpack.c.bf16 %v326, %v326
  %v391 = vpack.c.bf16 %v327, %v327
  %v392 = vpack.c.bf16 %v328, %v328
  %v393 = vpack.c.bf16 %v329, %v329
  %v394 = vpack.c.bf16 %v330, %v330
  %v395 = vpack.c.bf16 %v331, %v331
  %v396 = vpack.c.bf16 %v332, %v332
  %v397 = vpack.c.bf16 %v333, %v333
  %v398 = vpack.c.bf16 %v334, %v334
  %v399 = vpack.c.bf16 %v335, %v335
  %v400 = vpack.c.bf16 %v336, %v336
  %v401 = vpack.c.bf16 %v337, %v337
  %v402 = vpack.c.bf16 %v338, %v338
  %v403 = vpack.c.bf16 %v339, %v339
  %v404 = vpack.c.bf16 %v340, %v340
  %v405 = vpack.c.bf16 %v341, %v341
  %vm406 = vcmask 257024
  %407 = vst.msk [vmem:[%s3] sm:$0xf] %vm406, %v342
  %408 = vst.msk [vmem:[%s3 + $0x4] sm:$0xf] %vm406, %v343
  %409 = vst.msk [vmem:[%s3 + $0x8] sm:$0xf] %vm406, %v344
  %410 = vst.msk [vmem:[%s3 + $0xc] sm:$0xf] %vm406, %v345
  %411 = vst.msk [vmem:[%s3 + $0x10] sm:$0xf] %vm406, %v346
  %412 = vst.msk [vmem:[%s3 + $0x14] sm:$0xf] %vm406, %v347
  %413 = vst.msk [vmem:[%s3 + $0x18] sm:$0xf] %vm406, %v348
  %414 = vst.msk [vmem:[%s3 + $0x1c] sm:$0xf] %vm406, %v349
  %415 = vst.msk [vmem:[%s3 + $0x20] sm:$0xf] %vm406, %v350
  %416 = vst.msk [vmem:[%s3 + $0x24] sm:$0xf] %vm406, %v351
  %417 = vst.msk [vmem:[%s3 + $0x28] sm:$0xf] %vm406, %v352
  %418 = vst.msk [vmem:[%s3 + $0x2c] sm:$0xf] %vm406, %v353
  %419 = vst.msk [vmem:[%s3 + $0x30] sm:$0xf] %vm406, %v354
  %420 = vst.msk [vmem:[%s3 + $0x34] sm:$0xf] %vm406, %v355
  %421 = vst.msk [vmem:[%s3 + $0x38] sm:$0xf] %vm406, %v356
  %422 = vst.msk [vmem:[%s3 + $0x3c] sm:$0xf] %vm406, %v357
  %423 = vst.msk [vmem:[%s3 + $0x40] sm:$0xf] %vm406, %v358
  %424 = vst.msk [vmem:[%s3 + $0x44] sm:$0xf] %vm406, %v359
  %425 = vst.msk [vmem:[%s3 + $0x48] sm:$0xf] %vm406, %v360
  %426 = vst.msk [vmem:[%s3 + $0x4c] sm:$0xf] %vm406, %v361
  %427 = vst.msk [vmem:[%s3 + $0x50] sm:$0xf] %vm406, %v362
  %428 = vst.msk [vmem:[%s3 + $0x54] sm:$0xf] %vm406, %v363
  %429 = vst.msk [vmem:[%s3 + $0x58] sm:$0xf] %vm406, %v364
  %430 = vst.msk [vmem:[%s3 + $0x5c] sm:$0xf] %vm406, %v365
  %431 = vst.msk [vmem:[%s3 + $0x60] sm:$0xf] %vm406, %v366
  %432 = vst.msk [vmem:[%s3 + $0x64] sm:$0xf] %vm406, %v367
  %433 = vst.msk [vmem:[%s3 + $0x68] sm:$0xf] %vm406, %v368
  %434 = vst.msk [vmem:[%s3 + $0x6c] sm:$0xf] %vm406, %v369
  %435 = vst.msk [vmem:[%s3 + $0x70] sm:$0xf] %vm406, %v370
  %436 = vst.msk [vmem:[%s3 + $0x74] sm:$0xf] %vm406, %v371
  %437 = vst.msk [vmem:[%s3 + $0x78] sm:$0xf] %vm406, %v372
  %438 = vst.msk [vmem:[%s3 + $0x7c] sm:$0xf] %vm406, %v373
  %439 = vst.msk [vmem:[%s3 + $0x80] sm:$0xf] %vm406, %v374
  %440 = vst.msk [vmem:[%s3 + $0x84] sm:$0xf] %vm406, %v375
  %441 = vst.msk [vmem:[%s3 + $0x88] sm:$0xf] %vm406, %v376
  %442 = vst.msk [vmem:[%s3 + $0x8c] sm:$0xf] %vm406, %v377
  %443 = vst.msk [vmem:[%s3 + $0x90] sm:$0xf] %vm406, %v378
  %444 = vst.msk [vmem:[%s3 + $0x94] sm:$0xf] %vm406, %v379
  %445 = vst.msk [vmem:[%s3 + $0x98] sm:$0xf] %vm406, %v380
  %446 = vst.msk [vmem:[%s3 + $0x9c] sm:$0xf] %vm406, %v381
  %447 = vst.msk [vmem:[%s3 + $0xa0] sm:$0xf] %vm406, %v382
  %448 = vst.msk [vmem:[%s3 + $0xa4] sm:$0xf] %vm406, %v383
  %449 = vst.msk [vmem:[%s3 + $0xa8] sm:$0xf] %vm406, %v384
  %450 = vst.msk [vmem:[%s3 + $0xac] sm:$0xf] %vm406, %v385
  %451 = vst.msk [vmem:[%s3 + $0xb0] sm:$0xf] %vm406, %v386
  %452 = vst.msk [vmem:[%s3 + $0xb4] sm:$0xf] %vm406, %v387
  %453 = vst.msk [vmem:[%s3 + $0xb8] sm:$0xf] %vm406, %v388
  %454 = vst.msk [vmem:[%s3 + $0xbc] sm:$0xf] %vm406, %v389
  %455 = vst.msk [vmem:[%s3 + $0xc0] sm:$0xf] %vm406, %v390
  %456 = vst.msk [vmem:[%s3 + $0xc4] sm:$0xf] %vm406, %v391
  %457 = vst.msk [vmem:[%s3 + $0xc8] sm:$0xf] %vm406, %v392
  %458 = vst.msk [vmem:[%s3 + $0xcc] sm:$0xf] %vm406, %v393
  %459 = vst.msk [vmem:[%s3 + $0xd0] sm:$0xf] %vm406, %v394
  %460 = vst.msk [vmem:[%s3 + $0xd4] sm:$0xf] %vm406, %v395
  %461 = vst.msk [vmem:[%s3 + $0xd8] sm:$0xf] %vm406, %v396
  %462 = vst.msk [vmem:[%s3 + $0xdc] sm:$0xf] %vm406, %v397
  %463 = vst.msk [vmem:[%s3 + $0xe0] sm:$0xf] %vm406, %v398
  %464 = vst.msk [vmem:[%s3 + $0xe4] sm:$0xf] %vm406, %v399
  %465 = vst.msk [vmem:[%s3 + $0xe8] sm:$0xf] %vm406, %v400
  %466 = vst.msk [vmem:[%s3 + $0xec] sm:$0xf] %vm406, %v401
  %467 = vst.msk [vmem:[%s3 + $0xf0] sm:$0xf] %vm406, %v402
  %468 = vst.msk [vmem:[%s3 + $0xf4] sm:$0xf] %vm406, %v403
  %469 = vst.msk [vmem:[%s3 + $0xf8] sm:$0xf] %vm406, %v404
  %470 = vst.msk [vmem:[%s3 + $0xfc] sm:$0xf] %vm406, %v405
  // Predicated region
  $region14: #{conv_up_block.3} parent=0 // pred_check
    _
  $region15: #{conv_up_block.3} parent=0 // pred_check_branch
    %472 = sbr.rel (0) target = $region17
  $region16: #{conv_up_block.3} parent=0 // pred_region
    _
  $region17: #{conv_up_block.3} parent=0 // pred_fallthru
    _
  // Predicated region
  $region18: #{conv_up_block.3} parent=0 // pred_check
    _
  $region19: #{conv_up_block.3} parent=0 // pred_check_branch
    %474 = sbr.rel (0) target = $region21
  $region20: #{conv_up_block.3} parent=0 // pred_region
    _
  $region21: #{conv_up_block.3} parent=0 // pred_fallthru
    _

// kernel: conv_up_block.2
$region0: #{conv_up_block.2}
  #allocation0 [shape = 'u32[]', space=smem, size = 0x4, offset = 0x4, fixed_abs, tag = 'smem constant byte address 0x4 - core index']
  #allocation1 [shape = 'u32[72,128]{1,0:T(1,128)}', space=vmem, size = 0x9000, scoped, tag = 'internal scratch']
  %s0 = inlined_call_operand.vmem [shape: bf16[2,18,18,4], index: 0, kind: input, shape index: {}]
  %s1 = inlined_call_operand.vmem [shape: bf16[36,32], index: 1, kind: input, shape index: {}]
  %s2 = inlined_call_operand.vmem [shape: bf16[2,256,32], index: 2, kind: output, shape index: {0}]
  %s3 = inlined_call_operand.vmem [shape: f32[2,1,1,64], index: 3, kind: output, shape index: {1}]
  %4 = xla_tuple %s2, %s3
  %s5 = sld [smem:[#allocation0]]
  $region49: #{conv_up_block.2} parent=0
    _
  %s7 = ssub.s32 1, %s5
  %s8 = scalar_select 0, %s7, %s5
  loop: start=0, step=1, limit=4
  $region2: #{conv_up_block.2} parent=0 // loop_pre_header
    _
  $region3: #{conv_up_block.2} parent=0 // loop_header
    %s10 = sphi 0, %s14
    %p11 = scmp.ge.s32.totalorder %s10, 4
    %s17 = sphi 0, %s29
    %s18 = sphi 0, %s25
    %s19 = sphi 0, %s17
    %s20 = sphi 0, %s18
    %s21 = sphi 0, %s19
    %s22 = sphi 0, %s20
    %s32 = sphi 0, %s34
    %s35 = sphi 0, %s32
    %s36 = sphi 0, %s35
    %s52 = sphi 0, %s36
    %s56 = sphi 0, %s56
    %s58 = sphi 0, %s56
    %s59 = sphi 0, %s58
    %s73 = sphi 0, %s59
    %s81 = sphi 0, %s83
    %s84 = sphi 0, %s81
    %s85 = sphi 0, %s84
    %s101 = sphi 0, %s85
    %s109 = sphi 0, %s111
    %s112 = sphi 0, %s109
    %s113 = sphi 0, %s112
    %s129 = sphi 0, %s113
  $region4: #{conv_up_block.2} parent=0 // loop_header_branch
    %13 = sbr.rel (%p11) target = $region8
  $region5: #{conv_up_block.2} parent=0 // loop_body
    %s15 = ssub.s32 %s10, 1
    %s16 = ssub.s32 %s10, 2
    %s23 = sadd.s32 1, %s18
    %p24 = scmp.ge.s32.totalorder %s23, 1
    %s25 = scalar_select %p24, 0, %s23
    %s26 = sadd.s32 1, %s17
    %s27 = scalar_select %p24, %s26, %s17
    %p28 = scmp.ge.s32.totalorder %s27, 2
    %s29 = scalar_select %p28, 0, %s27
    %s30 = ssub.s32 %s17, %s29
    %p31 = scmp.eq.s32.totalorder %s30, 0
    %s33 = sadd.s32 %s32, 1
    %s34 = scalar_select %p31, %s32, %s33
    %p37 = pneg %p31
    %p38 = scmp.eq.s32.totalorder %s10, 1
    %p39 = por %p37, %p38
    %p40 = scmp.ne.s32.totalorder %s32, %s35
    %p41 = scmp.eq.s32.totalorder %s10, 0
    %p42 = por %p40, %p41
    %p43 = scmp.ne.s32.totalorder %s32, %s35
    %p44 = scmp.eq.s32.totalorder %s15, 1
    %p45 = por %p43, %p44
    %p46 = scmp.ne.s32.totalorder %s35, %s36
    %p47 = scmp.eq.s32.totalorder %s15, 0
    %p48 = por %p46, %p47
    %p49 = scmp.ne.s32.totalorder %s35, %s36
    %p50 = scmp.eq.s32.totalorder %s16, 1
    %p51 = por %p49, %p50
    %p53 = scmp.ne.s32.totalorder %s36, %s52
    %p54 = scmp.eq.s32.totalorder %s16, 0
    %p55 = por %p53, %p54
    %s57 = sadd.s32 %s56, 1
    %p60 = scmp.eq.s32.totalorder %s10, 1
    %p61 = scmp.ne.s32.totalorder %s56, %s58
    %p62 = scmp.eq.s32.totalorder %s10, 0
    %p63 = por %p61, %p62
    %p64 = scmp.ne.s32.totalorder %s56, %s58
    %p65 = scmp.eq.s32.totalorder %s15, 1
    %p66 = por %p64, %p65
    %p67 = scmp.ne.s32.totalorder %s58, %s59
    %p68 = scmp.eq.s32.totalorder %s15, 0
    %p69 = por %p67, %p68
    %p70 = scmp.ne.s32.totalorder %s58, %s59
    %p71 = scmp.eq.s32.totalorder %s16, 1
    %p72 = por %p70, %p71
    %p74 = scmp.ne.s32.totalorder %s59, %s73
    %p75 = scmp.eq.s32.totalorder %s16, 0
    %p76 = por %p74, %p75
    %s77 = ssub.s32 %s17, %s29
    %s78 = ssub.s32 %s18, %s25
    %s79 = sor.u32 %s77, %s78
    %p80 = scmp.eq.s32.totalorder %s79, 0
    %s82 = sadd.s32 %s81, 1
    %s83 = scalar_select %p80, %s81, %s82
    %p86 = pneg %p80
    %p87 = scmp.eq.s32.totalorder %s10, 1
    %p88 = por %p86, %p87
    %p89 = scmp.ne.s32.totalorder %s81, %s84
    %p90 = scmp.eq.s32.totalorder %s10, 0
    %p91 = por %p89, %p90
    %p92 = scmp.ne.s32.totalorder %s81, %s84
    %p93 = scmp.eq.s32.totalorder %s15, 1
    %p94 = por %p92, %p93
    %p95 = scmp.ne.s32.totalorder %s84, %s85
    %p96 = scmp.eq.s32.totalorder %s15, 0
    %p97 = por %p95, %p96
    %p98 = scmp.ne.s32.totalorder %s84, %s85
    %p99 = scmp.eq.s32.totalorder %s16, 1
    %p100 = por %p98, %p99
    %p102 = scmp.ne.s32.totalorder %s85, %s101
    %p103 = scmp.eq.s32.totalorder %s16, 0
    %p104 = por %p102, %p103
    %s105 = ssub.s32 %s17, %s29
    %s106 = ssub.s32 %s18, %s25
    %s107 = sor.u32 %s105, %s106
    %p108 = scmp.eq.s32.totalorder %s107, 0
    %s110 = sadd.s32 %s109, 1
    %s111 = scalar_select %p108, %s109, %s110
    %p114 = pneg %p108
    %p115 = scmp.eq.s32.totalorder %s10, 1
    %p116 = por %p114, %p115
    %p117 = scmp.ne.s32.totalorder %s109, %s112
    %p118 = scmp.eq.s32.totalorder %s10, 0
    %p119 = por %p117, %p118
    %p120 = scmp.ne.s32.totalorder %s109, %s112
    %p121 = scmp.eq.s32.totalorder %s15, 1
    %p122 = por %p120, %p121
    %p123 = scmp.ne.s32.totalorder %s112, %s113
    %p124 = scmp.eq.s32.totalorder %s15, 0
    %p125 = por %p123, %p124
    %p126 = scmp.ne.s32.totalorder %s112, %s113
    %p127 = scmp.eq.s32.totalorder %s16, 1
    %p128 = por %p126, %p127
    %p130 = scmp.ne.s32.totalorder %s113, %s129
    %p131 = scmp.eq.s32.totalorder %s16, 0
    %p132 = por %p130, %p131
    %p133 = scmp.le.s32.totalorder 1, %s10
    %p134 = scmp.lt.s32.totalorder %s10, 3
    %p135 = pnand %p133, %p134
    %p136 = pneg %p135
    // Predicated region
    $region9: #{conv_up_block.2} parent=5 // pred_check
      _
    $region10: #{conv_up_block.2} parent=5 // pred_check_branch
      %138 = sbr.rel (%p135) target = $region12
    $region11: #{conv_up_block.2} parent=5 // pred_region
      %s139 = ssub.s32 %s10, 1
      // Predicated region
      $region13: #{conv_up_block.2} parent=11 // pred_check
        %p140 = pneg %p69
      $region14: #{conv_up_block.2} parent=11 // pred_check_branch
        %142 = sbr.rel (%p140) target = $region16
      $region15: #{conv_up_block.2} parent=11 // pred_region
        _
      $region16: #{conv_up_block.2} parent=11 // pred_fallthru
        _
    $region12: #{conv_up_block.2} parent=5 // pred_fallthru
      _
    %p143 = scmp.lt.s32.totalorder %s10, 2
    // Predicated region
    $region17: #{conv_up_block.2} parent=5 // pred_check
      %p144 = pneg %p143
    $region18: #{conv_up_block.2} parent=5 // pred_check_branch
      %146 = sbr.rel (%p144) target = $region20
    $region19: #{conv_up_block.2} parent=5 // pred_region
      // Predicated region
      $region21: #{conv_up_block.2} parent=19 // pred_check
        %p147 = pneg %p42
      $region22: #{conv_up_block.2} parent=19 // pred_check_branch
        %149 = sbr.rel (%p147) target = $region24
      $region23: #{conv_up_block.2} parent=19 // pred_region
        %p150 = scmp.lt.s32.totalorder %s17, 1
        %s151 = scalar_select %p150, %s17, 1
        %s152 = smul.addr %s151, 54
        %s153 = smul.addr %s152, 4
        %s154 = scalar_lea.vmem %s0, %s153
      $region24: #{conv_up_block.2} parent=19 // pred_fallthru
        _
    $region20: #{conv_up_block.2} parent=5 // pred_fallthru
      _
    %p155 = scmp.le.s32.totalorder 1, %s10
    %p156 = scmp.lt.s32.totalorder %s10, 3
    %p157 = pnand %p155, %p156
    %p158 = pneg %p157
    // Predicated region
    $region25: #{conv_up_block.2} parent=5 // pred_check
      _
    $region26: #{conv_up_block.2} parent=5 // pred_check_branch
      %160 = sbr.rel (%p157) target = $region28
    $region27: #{conv_up_block.2} parent=5 // pred_region
      %s161 = ssub.s32 %s10, 1
      %p162 = scmp.lt.s32.totalorder %s19, 1
      %s163 = scalar_select %p162, %s19, 1
      %s164 = smul.addr %s163, 54
      %s165 = smul.addr %s164, 4
      %s166 = scalar_lea.vmem %s0, %s165
      %p167 = pneg %p48
      %p168 = pneg %p45
      %p169 = pneg %p69
      %p170 = pneg %p66
      %p171 = pneg %p97
      %p172 = pneg %p94
      %s173 = smul.u32 32, %s20
      %p174 = scmp.lt.s32.totalorder %s19, 1
      %s175 = scalar_select %p174, %s19, 1
      %p176 = scmp.lt.s32.totalorder %s173, 31
      %s177 = scalar_select %p176, %s173, 31
      %s178 = smul.addr %s175, 32
      %s179 = sadd.s32 %s177, %s178
      %s180 = smul.addr %s179, 4
      %s181 = scalar_lea.vmem %s2, %s180
      %p182 = pneg %p125
      %p183 = pneg %p122
      %p184 = scmp.lt.s32.totalorder %s19, 1
      %s185 = scalar_select %p184, %s19, 1
      %p186 = scmp.lt.s32.totalorder %s20, 0
      %s187 = scalar_select %p186, %s20, 0
      %s188 = sadd.s32 %s187, %s185
      %s189 = scalar_lea.vmem %s3, %s188
      %p190 = scmp.lt.s32.totalorder %s19, 1
      %s191 = scalar_select %p190, %s19, 1
      %s192 = smul.addr %s191, 54
      %s193 = smul.addr %s192, 4
      %s194 = scalar_lea.vmem %s0, %s193
      %s195 = smul.u32 32, %s20
      %p196 = scmp.lt.s32.totalorder %s19, 1
      %s197 = scalar_select %p196, %s19, 1
      %p198 = scmp.lt.s32.totalorder %s195, 31
      %s199 = scalar_select %p198, %s195, 31
      %s200 = smul.addr %s197, 32
      %s201 = sadd.s32 %s199, %s200
      %s202 = smul.addr %s201, 4
      %s203 = scalar_lea.vmem %s2, %s202
      %s204 = smul.u32 32, %s20
      %p205 = scmp.lt.s32.totalorder %s19, 1
      %s206 = scalar_select %p205, %s19, 1
      %p207 = scmp.lt.s32.totalorder %s20, 0
      %s208 = scalar_select %p207, %s20, 0
      %s209 = sadd.s32 %s208, %s206
      %s210 = scalar_lea.vmem %s3, %s209
      %s212 = smul.u32 %s20, 16
      %s213 = smul.u32 %s212, 3
      %s214 = smul.addr %s213, 4
      %s215 = scalar_lea.vmem %s194, %s214
      %v216 = vld [vmem:[%s215] sm:$0xf]
      %v217 = vld [vmem:[%s215 + $0x4] sm:$0xf]
      %v218 = vld [vmem:[%s215 + $0xc] sm:$0xf]
      %v219 = vld [vmem:[%s215 + $0x10] sm:$0xf]
      %v220 = vld [vmem:[%s215 + $0x18] sm:$0xf]
      %v221 = vld [vmem:[%s215 + $0x1c] sm:$0xf]
      %v222 = vld [vmem:[%s215 + $0x24] sm:$0xf]
      %v223 = vld [vmem:[%s215 + $0x28] sm:$0xf]
      %v224 = vld [vmem:[%s215 + $0x30] sm:$0xf]
      %v225 = vld [vmem:[%s215 + $0x34] sm:$0xf]
      %v226 = vld [vmem:[%s215 + $0x3c] sm:$0xf]
      %v227 = vld [vmem:[%s215 + $0x40] sm:$0xf]
      %v228 = vld [vmem:[%s215 + $0x48] sm:$0xf]
      %v229 = vld [vmem:[%s215 + $0x4c] sm:$0xf]
      %v230 = vld [vmem:[%s215 + $0x54] sm:$0xf]
      %v231 = vld [vmem:[%s215 + $0x58] sm:$0xf]
      %v232 = vld [vmem:[%s215 + $0x60] sm:$0xf]
      %v233 = vld [vmem:[%s215 + $0x64] sm:$0xf]
      %v234 = vld [vmem:[%s215 + $0x6c] sm:$0xf]
      %v235 = vld [vmem:[%s215 + $0x70] sm:$0xf]
      %v236 = vld [vmem:[%s215 + $0x78] sm:$0xf]
      %v237 = vld [vmem:[%s215 + $0x7c] sm:$0xf]
      %v238 = vld [vmem:[%s215 + $0x84] sm:$0xf]
      %v239 = vld [vmem:[%s215 + $0x88] sm:$0xf]
      %v240 = vld [vmem:[%s215 + $0x90] sm:$0xf]
      %v241 = vld [vmem:[%s215 + $0x94] sm:$0xf]
      %v242 = vld [vmem:[%s215 + $0x9c] sm:$0xf]
      %v243 = vld [vmem:[%s215 + $0xa0] sm:$0xf]
      %v244 = vld [vmem:[%s215 + $0xa8] sm:$0xf]
      %v245 = vld [vmem:[%s215 + $0xac] sm:$0xf]
      %v246 = vld [vmem:[%s215 + $0xb4] sm:$0xf]
      %v247 = vld [vmem:[%s215 + $0xb8] sm:$0xf]
      %v248 = vld [vmem:[%s215 + $0x8] sm:$0x1]
      %v249 = vld [vmem:[%s215 + $0x14] sm:$0x1]
      %v250 = vld [vmem:[%s215 + $0x20] sm:$0x1]
      %v251 = vld [vmem:[%s215 + $0x2c] sm:$0x1]
      %v252 = vld [vmem:[%s215 + $0x38] sm:$0x1]
      %v253 = vld [vmem:[%s215 + $0x44] sm:$0x1]
      %v254 = vld [vmem:[%s215 + $0x50] sm:$0x1]
      %v255 = vld [vmem:[%s215 + $0x5c] sm:$0x1]
      %v256 = vld [vmem:[%s215 + $0x68] sm:$0x1]
      %v257 = vld [vmem:[%s215 + $0x74] sm:$0x1]
      %v258 = vld [vmem:[%s215 + $0x80] sm:$0x1]
      %v259 = vld [vmem:[%s215 + $0x8c] sm:$0x1]
      %v260 = vld [vmem:[%s215 + $0x98] sm:$0x1]
      %v261 = vld [vmem:[%s215 + $0xa4] sm:$0x1]
      %v262 = vld [vmem:[%s215 + $0xb0] sm:$0x1]
      %v263 = vld [vmem:[%s215 + $0xbc] sm:$0x1]
      %v264 = vld [vmem:[%s215] sm:$0xe]
      %v265 = vld [vmem:[%s215 + $0xc] sm:$0xe]
      %v266 = vld [vmem:[%s215 + $0x18] sm:$0xe]
      %v267 = vld [vmem:[%s215 + $0x24] sm:$0xe]
      %v268 = vld [vmem:[%s215 + $0x30] sm:$0xe]
      %v269 = vld [vmem:[%s215 + $0x3c] sm:$0xe]
      %v270 = vld [vmem:[%s215 + $0x48] sm:$0xe]
      %v271 = vld [vmem:[%s215 + $0x54] sm:$0xe]
      %v272 = vld [vmem:[%s215 + $0x60] sm:$0xe]
      %v273 = vld [vmem:[%s215 + $0x6c] sm:$0xe]
      %v274 = vld [vmem:[%s215 + $0x78] sm:$0xe]
      %v275 = vld [vmem:[%s215 + $0x84] sm:$0xe]
      %v276 = vld [vmem:[%s215 + $0x90] sm:$0xe]
      %v277 = vld [vmem:[%s215 + $0x9c] sm:$0xe]
      %v278 = vld [vmem:[%s215 + $0xa8] sm:$0xe]
      %v279 = vld [vmem:[%s215 + $0xb4] sm:$0xe]
      %s280 = sadd.s32 %s212, 1
      %s281 = smul.u32 %s280, 3
      %s282 = smul.addr %s281, 4
      %s283 = scalar_lea.vmem %s194, %s282
      %v284 = vld [vmem:[%s283] sm:$0xf]
      %v285 = vld [vmem:[%s283 + $0x4] sm:$0xf]
      %v286 = vld [vmem:[%s283 + $0xc] sm:$0xf]
      %v287 = vld [vmem:[%s283 + $0x10] sm:$0xf]
      %v288 = vld [vmem:[%s283 + $0x18] sm:$0xf]
      %v289 = vld [vmem:[%s283 + $0x1c] sm:$0xf]
      %v290 = vld [vmem:[%s283 + $0x24] sm:$0xf]
      %v291 = vld [vmem:[%s283 + $0x28] sm:$0xf]
      %v292 = vld [vmem:[%s283 + $0x30] sm:$0xf]
      %v293 = vld [vmem:[%s283 + $0x34] sm:$0xf]
      %v294 = vld [vmem:[%s283 + $0x3c] sm:$0xf]
      %v295 = vld [vmem:[%s283 + $0x40] sm:$0xf]
      %v296 = vld [vmem:[%s283 + $0x48] sm:$0xf]
      %v297 = vld [vmem:[%s283 + $0x4c] sm:$0xf]
      %v298 = vld [vmem:[%s283 + $0x54] sm:$0xf]
      %v299 = vld [vmem:[%s283 + $0x58] sm:$0xf]
      %v300 = vld [vmem:[%s283 + $0x60] sm:$0xf]
      %v301 = vld [vmem:[%s283 + $0x64] sm:$0xf]
      %v302 = vld [vmem:[%s283 + $0x6c] sm:$0xf]
      %v303 = vld [vmem:[%s283 + $0x70] sm:$0xf]
      %v304 = vld [vmem:[%s283 + $0x78] sm:$0xf]
      %v305 = vld [vmem:[%s283 + $0x7c] sm:$0xf]
      %v306 = vld [vmem:[%s283 + $0x84] sm:$0xf]
      %v307 = vld [vmem:[%s283 + $0x88] sm:$0xf]
      %v308 = vld [vmem:[%s283 + $0x90] sm:$0xf]
      %v309 = vld [vmem:[%s283 + $0x94] sm:$0xf]
      %v310 = vld [vmem:[%s283 + $0x9c] sm:$0xf]
      %v311 = vld [vmem:[%s283 + $0xa0] sm:$0xf]
      %v312 = vld [vmem:[%s283 + $0xa8] sm:$0xf]
      %v313 = vld [vmem:[%s283 + $0xac] sm:$0xf]
      %v314 = vld [vmem:[%s283 + $0xb4] sm:$0xf]
      %v315 = vld [vmem:[%s283 + $0xb8] sm:$0xf]
      %v316 = vld [vmem:[%s283 + $0x8] sm:$0x1]
      %v317 = vld [vmem:[%s283 + $0x14] sm:$0x1]
      %v318 = vld [vmem:[%s283 + $0x20] sm:$0x1]
      %v319 = vld [vmem:[%s283 + $0x2c] sm:$0x1]
      %v320 = vld [vmem:[%s283 + $0x38] sm:$0x1]
      %v321 = vld [vmem:[%s283 + $0x44] sm:$0x1]
      %v322 = vld [vmem:[%s283 + $0x50] sm:$0x1]
      %v323 = vld [vmem:[%s283 + $0x5c] sm:$0x1]
      %v324 = vld [vmem:[%s283 + $0x68] sm:$0x1]
      %v325 = vld [vmem:[%s283 + $0x74] sm:$0x1]
      %v326 = vld [vmem:[%s283 + $0x80] sm:$0x1]
      %v327 = vld [vmem:[%s283 + $0x8c] sm:$0x1]
      %v328 = vld [vmem:[%s283 + $0x98] sm:$0x1]
      %v329 = vld [vmem:[%s283 + $0xa4] sm:$0x1]
      %v330 = vld [vmem:[%s283 + $0xb0] sm:$0x1]
      %v331 = vld [vmem:[%s283 + $0xbc] sm:$0x1]
      %v332 = vld [vmem:[%s283] sm:$0xe]
      %v333 = vld [vmem:[%s283 + $0xc] sm:$0xe]
      %v334 = vld [vmem:[%s283 + $0x18] sm:$0xe]
      %v335 = vld [vmem:[%s283 + $0x24] sm:$0xe]
      %v336 = vld [vmem:[%s283 + $0x30] sm:$0xe]
      %v337 = vld [vmem:[%s283 + $0x3c] sm:$0xe]
      %v338 = vld [vmem:[%s283 + $0x48] sm:$0xe]
      %v339 = vld [vmem:[%s283 + $0x54] sm:$0xe]
      %v340 = vld [vmem:[%s283 + $0x60] sm:$0xe]
      %v341 = vld [vmem:[%s283 + $0x6c] sm:$0xe]
      %v342 = vld [vmem:[%s283 + $0x78] sm:$0xe]
      %v343 = vld [vmem:[%s283 + $0x84] sm:$0xe]
      %v344 = vld [vmem:[%s283 + $0x90] sm:$0xe]
      %v345 = vld [vmem:[%s283 + $0x9c] sm:$0xe]
      %v346 = vld [vmem:[%s283 + $0xa8] sm:$0xe]
      %v347 = vld [vmem:[%s283 + $0xb4] sm:$0xe]
      %s348 = sadd.s32 %s212, 2
      %s349 = smul.u32 %s348, 3
      %s350 = smul.addr %s349, 4
      %s351 = scalar_lea.vmem %s194, %s350
      %v352 = vld [vmem:[%s351] sm:$0xf]
      %v353 = vld [vmem:[%s351 + $0x4] sm:$0xf]
      %v354 = vld [vmem:[%s351 + $0xc] sm:$0xf]
      %v355 = vld [vmem:[%s351 + $0x10] sm:$0xf]
      %v356 = vld [vmem:[%s351 + $0x18] sm:$0xf]
      %v357 = vld [vmem:[%s351 + $0x1c] sm:$0xf]
      %v358 = vld [vmem:[%s351 + $0x24] sm:$0xf]
      %v359 = vld [vmem:[%s351 + $0x28] sm:$0xf]
      %v360 = vld [vmem:[%s351 + $0x30] sm:$0xf]
      %v361 = vld [vmem:[%s351 + $0x34] sm:$0xf]
      %v362 = vld [vmem:[%s351 + $0x3c] sm:$0xf]
      %v363 = vld [vmem:[%s351 + $0x40] sm:$0xf]
      %v364 = vld [vmem:[%s351 + $0x48] sm:$0xf]
      %v365 = vld [vmem:[%s351 + $0x4c] sm:$0xf]
      %v366 = vld [vmem:[%s351 + $0x54] sm:$0xf]
      %v367 = vld [vmem:[%s351 + $0x58] sm:$0xf]
      %v368 = vld [vmem:[%s351 + $0x60] sm:$0xf]
      %v369 = vld [vmem:[%s351 + $0x64] sm:$0xf]
      %v370 = vld [vmem:[%s351 + $0x6c] sm:$0xf]
      %v371 = vld [vmem:[%s351 + $0x70] sm:$0xf]
      %v372 = vld [vmem:[%s351 + $0x78] sm:$0xf]
      %v373 = vld [vmem:[%s351 + $0x7c] sm:$0xf]
      %v374 = vld [vmem:[%s351 + $0x84] sm:$0xf]
      %v375 = vld [vmem:[%s351 + $0x88] sm:$0xf]
      %v376 = vld [vmem:[%s351 + $0x90] sm:$0xf]
      %v377 = vld [vmem:[%s351 + $0x94] sm:$0xf]
      %v378 = vld [vmem:[%s351 + $0x9c] sm:$0xf]
      %v379 = vld [vmem:[%s351 + $0xa0] sm:$0xf]
      %v380 = vld [vmem:[%s351 + $0xa8] sm:$0xf]
      %v381 = vld [vmem:[%s351 + $0xac] sm:$0xf]
      %v382 = vld [vmem:[%s351 + $0xb4] sm:$0xf]
      %v383 = vld [vmem:[%s351 + $0xb8] sm:$0xf]
      %v384 = vld [vmem:[%s351 + $0x8] sm:$0x1]
      %v385 = vld [vmem:[%s351 + $0x14] sm:$0x1]
      %v386 = vld [vmem:[%s351 + $0x20] sm:$0x1]
      %v387 = vld [vmem:[%s351 + $0x2c] sm:$0x1]
      %v388 = vld [vmem:[%s351 + $0x38] sm:$0x1]
      %v389 = vld [vmem:[%s351 + $0x44] sm:$0x1]
      %v390 = vld [vmem:[%s351 + $0x50] sm:$0x1]
      %v391 = vld [vmem:[%s351 + $0x5c] sm:$0x1]
      %v392 = vld [vmem:[%s351 + $0x68] sm:$0x1]
      %v393 = vld [vmem:[%s351 + $0x74] sm:$0x1]
      %v394 = vld [vmem:[%s351 + $0x80] sm:$0x1]
      %v395 = vld [vmem:[%s351 + $0x8c] sm:$0x1]
      %v396 = vld [vmem:[%s351 + $0x98] sm:$0x1]
      %v397 = vld [vmem:[%s351 + $0xa4] sm:$0x1]
      %v398 = vld [vmem:[%s351 + $0xb0] sm:$0x1]
      %v399 = vld [vmem:[%s351 + $0xbc] sm:$0x1]
      %v400 = vld [vmem:[%s351] sm:$0xe]
      %v401 = vld [vmem:[%s351 + $0xc] sm:$0xe]
      %v402 = vld [vmem:[%s351 + $0x18] sm:$0xe]
      %v403 = vld [vmem:[%s351 + $0x24] sm:$0xe]
      %v404 = vld [vmem:[%s351 + $0x30] sm:$0xe]
      %v405 = vld [vmem:[%s351 + $0x3c] sm:$0xe]
      %v406 = vld [vmem:[%s351 + $0x48] sm:$0xe]
      %v407 = vld [vmem:[%s351 + $0x54] sm:$0xe]
      %v408 = vld [vmem:[%s351 + $0x60] sm:$0xe]
      %v409 = vld [vmem:[%s351 + $0x6c] sm:$0xe]
      %v410 = vld [vmem:[%s351 + $0x78] sm:$0xe]
      %v411 = vld [vmem:[%s351 + $0x84] sm:$0xe]
      %v412 = vld [vmem:[%s351 + $0x90] sm:$0xe]
      %v413 = vld [vmem:[%s351 + $0x9c] sm:$0xe]
      %v414 = vld [vmem:[%s351 + $0xa8] sm:$0xe]
      %v415 = vld [vmem:[%s351 + $0xb4] sm:$0xe]
      %v448 = vunpack.c.l.b16 %v216
      %v449 = vunpack.c.l.b16 %v217
      %v450 = vunpack.c.l.b16 %v218
      %v451 = vunpack.c.l.b16 %v219
      %v452 = vunpack.c.l.b16 %v220
      %v453 = vunpack.c.l.b16 %v221
      %v454 = vunpack.c.l.b16 %v222
      %v455 = vunpack.c.l.b16 %v223
      %v456 = vunpack.c.l.b16 %v224
      %v457 = vunpack.c.l.b16 %v225
      %v458 = vunpack.c.l.b16 %v226
      %v459 = vunpack.c.l.b16 %v227
      %v460 = vunpack.c.l.b16 %v228
      %v461 = vunpack.c.l.b16 %v229
      %v462 = vunpack.c.l.b16 %v230
      %v463 = vunpack.c.l.b16 %v231
      %v464 = vunpack.c.l.b16 %v232
      %v465 = vunpack.c.l.b16 %v233
      %v466 = vunpack.c.l.b16 %v234
      %v467 = vunpack.c.l.b16 %v235
      %v468 = vunpack.c.l.b16 %v236
      %v469 = vunpack.c.l.b16 %v237
      %v470 = vunpack.c.l.b16 %v238
      %v471 = vunpack.c.l.b16 %v239
      %v472 = vunpack.c.l.b16 %v240
      %v473 = vunpack.c.l.b16 %v241
      %v474 = vunpack.c.l.b16 %v242
      %v475 = vunpack.c.l.b16 %v243
      %v476 = vunpack.c.l.b16 %v244
      %v477 = vunpack.c.l.b16 %v245
      %v478 = vunpack.c.l.b16 %v246
      %v479 = vunpack.c.l.b16 %v247
      %v480 = vpack.c.b16 %v449, %v448
      %v481 = vpack.c.b16 %v451, %v450
      %v482 = vpack.c.b16 %v453, %v452
      %v483 = vpack.c.b16 %v455, %v454
      %v484 = vpack.c.b16 %v457, %v456
      %v485 = vpack.c.b16 %v459, %v458
      %v486 = vpack.c.b16 %v461, %v460
      %v487 = vpack.c.b16 %v463, %v462
      %v488 = vpack.c.b16 %v465, %v464
      %v489 = vpack.c.b16 %v467, %v466
      %v490 = vpack.c.b16 %v469, %v468
      %v491 = vpack.c.b16 %v471, %v470
      %v492 = vpack.c.b16 %v473, %v472
      %v493 = vpack.c.b16 %v475, %v474
      %v494 = vpack.c.b16 %v477, %v476
      %v495 = vpack.c.b16 %v479, %v478
      %v512 = vunpack.c.l.b16 %v248
      %v513 = vunpack.c.l.b16 %v249
      %v514 = vunpack.c.l.b16 %v250
      %v515 = vunpack.c.l.b16 %v251
      %v516 = vunpack.c.l.b16 %v252
      %v517 = vunpack.c.l.b16 %v253
      %v518 = vunpack.c.l.b16 %v254
      %v519 = vunpack.c.l.b16 %v255
      %v520 = vunpack.c.l.b16 %v256
      %v521 = vunpack.c.l.b16 %v257
      %v522 = vunpack.c.l.b16 %v258
      %v523 = vunpack.c.l.b16 %v259
      %v524 = vunpack.c.l.b16 %v260
      %v525 = vunpack.c.l.b16 %v261
      %v526 = vunpack.c.l.b16 %v262
      %v527 = vunpack.c.l.b16 %v263
      %v528 = vpack.c.b16 %v512, %v512
      %v529 = vpack.c.b16 %v513, %v513
      %v530 = vpack.c.b16 %v514, %v514
      %v531 = vpack.c.b16 %v515, %v515
      %v532 = vpack.c.b16 %v516, %v516
      %v533 = vpack.c.b16 %v517, %v517
      %v534 = vpack.c.b16 %v518, %v518
      %v535 = vpack.c.b16 %v519, %v519
      %v536 = vpack.c.b16 %v520, %v520
      %v537 = vpack.c.b16 %v521, %v521
      %v538 = vpack.c.b16 %v522, %v522
      %v539 = vpack.c.b16 %v523, %v523
      %v540 = vpack.c.b16 %v524, %v524
      %v541 = vpack.c.b16 %v525, %v525
      %v542 = vpack.c.b16 %v526, %v526
      %v543 = vpack.c.b16 %v527, %v527
      %vm544 = vsmask.f32 7424
      %v546 = vshrl.u32 %v480, 16
      %v548 = vshll.u32 %v480, 16
      %v550 = vrot.slane %v548, 1
      %v551 = vor.u32 %v546, %v550
      %v553 = vshll.u32 %v528, 16
      %v555 = vrot.slane %v553, 1
      %v556 = vsel %vm544, %v551, %v555
      %v558 = vshrl.u32 %v481, 16
      %v560 = vshll.u32 %v481, 16
      %v562 = vrot.slane %v560, 1
      %v563 = vor.u32 %v558, %v562
      %v565 = vshll.u32 %v529, 16
      %v567 = vrot.slane %v565, 1
      %v568 = vsel %vm544, %v563, %v567
      %v570 = vshrl.u32 %v482, 16
      %v572 = vshll.u32 %v482, 16
      %v574 = vrot.slane %v572, 1
      %v575 = vor.u32 %v570, %v574
      %v577 = vshll.u32 %v530, 16
      %v579 = vrot.slane %v577, 1
      %v580 = vsel %vm544, %v575, %v579
      %v582 = vshrl.u32 %v483, 16
      %v584 = vshll.u32 %v483, 16
      %v586 = vrot.slane %v584, 1
      %v587 = vor.u32 %v582, %v586
      %v589 = vshll.u32 %v531, 16
      %v591 = vrot.slane %v589, 1
      %v592 = vsel %vm544, %v587, %v591
      %v594 = vshrl.u32 %v484, 16
      %v596 = vshll.u32 %v484, 16
      %v598 = vrot.slane %v596, 1
      %v599 = vor.u32 %v594, %v598
      %v601 = vshll.u32 %v532, 16
      %v603 = vrot.slane %v601, 1
      %v604 = vsel %vm544, %v599, %v603
      %v606 = vshrl.u32 %v485, 16
      %v608 = vshll.u32 %v485, 16
      %v610 = vrot.slane %v608, 1
      %v611 = vor.u32 %v606, %v610
      %v613 = vshll.u32 %v533, 16
      %v615 = vrot.slane %v613, 1
      %v616 = vsel %vm544, %v611, %v615
      %v618 = vshrl.u32 %v486, 16
      %v620 = vshll.u32 %v486, 16
      %v622 = vrot.slane %v620, 1
      %v623 = vor.u32 %v618, %v622
      %v625 = vshll.u32 %v534, 16
      %v627 = vrot.slane %v625, 1
      %v628 = vsel %vm544, %v623, %v627
      %v630 = vshrl.u32 %v487, 16
      %v632 = vshll.u32 %v487, 16
      %v634 = vrot.slane %v632, 1
      %v635 = vor.u32 %v630, %v634
      %v637 = vshll.u32 %v535, 16
      %v639 = vrot.slane %v637, 1
      %v640 = vsel %vm544, %v635, %v639
      %v642 = vshrl.u32 %v488, 16
      %v644 = vshll.u32 %v488, 16
      %v646 = vrot.slane %v644, 1
      %v647 = vor.u32 %v642, %v646
      %v649 = vshll.u32 %v536, 16
      %v651 = vrot.slane %v649, 1
      %v652 = vsel %vm544, %v647, %v651
      %v654 = vshrl.u32 %v489, 16
      %v656 = vshll.u32 %v489, 16
      %v658 = vrot.slane %v656, 1
      %v659 = vor.u32 %v654, %v658
      %v661 = vshll.u32 %v537, 16
      %v663 = vrot.slane %v661, 1
      %v664 = vsel %vm544, %v659, %v663
      %v666 = vshrl.u32 %v490, 16
      %v668 = vshll.u32 %v490, 16
      %v670 = vrot.slane %v668, 1
      %v671 = vor.u32 %v666, %v670
      %v673 = vshll.u32 %v538, 16
      %v675 = vrot.slane %v673, 1
      %v676 = vsel %vm544, %v671, %v675
      %v678 = vshrl.u32 %v491, 16
      %v680 = vshll.u32 %v491, 16
      %v682 = vrot.slane %v680, 1
      %v683 = vor.u32 %v678, %v682
      %v685 = vshll.u32 %v539, 16
      %v687 = vrot.slane %v685, 1
      %v688 = vsel %vm544, %v683, %v687
      %v690 = vshrl.u32 %v492, 16
      %v692 = vshll.u32 %v492, 16
      %v694 = vrot.slane %v692, 1
      %v695 = vor.u32 %v690, %v694
      %v697 = vshll.u32 %v540, 16
      %v699 = vrot.slane %v697, 1
      %v700 = vsel %vm544, %v695, %v699
      %v702 = vshrl.u32 %v493, 16
      %v704 = vshll.u32 %v493, 16
      %v706 = vrot.slane %v704, 1
      %v707 = vor.u32 %v702, %v706
      %v709 = vshll.u32 %v541, 16
      %v711 = vrot.slane %v709, 1
      %v712 = vsel %vm544, %v707, %v711
      %v714 = vshrl.u32 %v494, 16
      %v716 = vshll.u32 %v494, 16
      %v718 = vrot.slane %v716, 1
      %v719 = vor.u32 %v714, %v718
      %v721 = vshll.u32 %v542, 16
      %v723 = vrot.slane %v721, 1
      %v724 = vsel %vm544, %v719, %v723
      %v726 = vshrl.u32 %v495, 16
      %v728 = vshll.u32 %v495, 16
      %v730 = vrot.slane %v728, 1
      %v731 = vor.u32 %v726, %v730
      %v733 = vshll.u32 %v543, 16
      %v735 = vrot.slane %v733, 1
      %v736 = vsel %vm544, %v731, %v735
      %737 = vrot.lane.b32.xlu0 %v556, 4
      %v738 = vpop.permute.xlu0 %737
      %739 = vrot.lane.b32.xlu0 %v568, 4
      %v740 = vpop.permute.xlu0 %739
      %741 = vrot.lane.b32.xlu0 %v580, 4
      %v742 = vpop.permute.xlu0 %741
      %743 = vrot.lane.b32.xlu0 %v592, 4
      %v744 = vpop.permute.xlu0 %743
      %745 = vrot.lane.b32.xlu0 %v604, 4
      %v746 = vpop.permute.xlu0 %745
      %747 = vrot.lane.b32.xlu0 %v616, 4
      %v748 = vpop.permute.xlu0 %747
      %749 = vrot.lane.b32.xlu0 %v628, 4
      %v750 = vpop.permute.xlu0 %749
      %751 = vrot.lane.b32.xlu0 %v640, 4
      %v752 = vpop.permute.xlu0 %751
      %753 = vrot.lane.b32.xlu0 %v652, 4
      %v754 = vpop.permute.xlu0 %753
      %755 = vrot.lane.b32.xlu0 %v664, 4
      %v756 = vpop.permute.xlu0 %755
      %757 = vrot.lane.b32.xlu0 %v676, 4
      %v758 = vpop.permute.xlu0 %757
      %759 = vrot.lane.b32.xlu0 %v688, 4
      %v760 = vpop.permute.xlu0 %759
      %761 = vrot.lane.b32.xlu0 %v700, 4
      %v762 = vpop.permute.xlu0 %761
      %763 = vrot.lane.b32.xlu0 %v712, 4
      %v764 = vpop.permute.xlu0 %763
      %765 = vrot.lane.b32.xlu0 %v724, 4
      %v766 = vpop.permute.xlu0 %765
      %767 = vrot.lane.b32.xlu0 %v736, 4
      %v768 = vpop.permute.xlu0 %767
      %v785 = vunpack.c.l.b16 %v264
      %v786 = vunpack.c.l.b16 %v265
      %v787 = vunpack.c.l.b16 %v266
      %v788 = vunpack.c.l.b16 %v267
      %v789 = vunpack.c.l.b16 %v268
      %v790 = vunpack.c.l.b16 %v269
      %v791 = vunpack.c.l.b16 %v270
      %v792 = vunpack.c.l.b16 %v271
      %v793 = vunpack.c.l.b16 %v272
      %v794 = vunpack.c.l.b16 %v273
      %v795 = vunpack.c.l.b16 %v274
      %v796 = vunpack.c.l.b16 %v275
      %v797 = vunpack.c.l.b16 %v276
      %v798 = vunpack.c.l.b16 %v277
      %v799 = vunpack.c.l.b16 %v278
      %v800 = vunpack.c.l.b16 %v279
      %v801 = vpack.c.b16 %v449, %v785
      %v802 = vpack.c.b16 %v451, %v786
      %v803 = vpack.c.b16 %v453, %v787
      %v804 = vpack.c.b16 %v455, %v788
      %v805 = vpack.c.b16 %v457, %v789
      %v806 = vpack.c.b16 %v459, %v790
      %v807 = vpack.c.b16 %v461, %v791
      %v808 = vpack.c.b16 %v463, %v792
      %v809 = vpack.c.b16 %v465, %v793
      %v810 = vpack.c.b16 %v467, %v794
      %v811 = vpack.c.b16 %v469, %v795
      %v812 = vpack.c.b16 %v471, %v796
      %v813 = vpack.c.b16 %v473, %v797
      %v814 = vpack.c.b16 %v475, %v798
      %v815 = vpack.c.b16 %v477, %v799
      %v816 = vpack.c.b16 %v479, %v800
      %vm817 = vcmask 1046528
      %v818 = vrot.slane %v801, 1
      %v819 = vrot.slane %v528, 1
      %v820 = vsel %vm817, %v818, %v819
      %v821 = vrot.slane %v802, 1
      %v822 = vrot.slane %v529, 1
      %v823 = vsel %vm817, %v821, %v822
      %v824 = vrot.slane %v803, 1
      %v825 = vrot.slane %v530, 1
      %v826 = vsel %vm817, %v824, %v825
      %v827 = vrot.slane %v804, 1
      %v828 = vrot.slane %v531, 1
      %v829 = vsel %vm817, %v827, %v828
      %v830 = vrot.slane %v805, 1
      %v831 = vrot.slane %v532, 1
      %v832 = vsel %vm817, %v830, %v831
      %v833 = vrot.slane %v806, 1
      %v834 = vrot.slane %v533, 1
      %v835 = vsel %vm817, %v833, %v834
      %v836 = vrot.slane %v807, 1
      %v837 = vrot.slane %v534, 1
      %v838 = vsel %vm817, %v836, %v837
      %v839 = vrot.slane %v808, 1
      %v840 = vrot.slane %v535, 1
      %v841 = vsel %vm817, %v839, %v840
      %v842 = vrot.slane %v809, 1
      %v843 = vrot.slane %v536, 1
      %v844 = vsel %vm817, %v842, %v843
      %v845 = vrot.slane %v810, 1
      %v846 = vrot.slane %v537, 1
      %v847 = vsel %vm817, %v845, %v846
      %v848 = vrot.slane %v811, 1
      %v849 = vrot.slane %v538, 1
      %v850 = vsel %vm817, %v848, %v849
      %v851 = vrot.slane %v812, 1
      %v852 = vrot.slane %v539, 1
      %v853 = vsel %vm817, %v851, %v852
      %v854 = vrot.slane %v813, 1
      %v855 = vrot.slane %v540, 1
      %v856 = vsel %vm817, %v854, %v855
      %v857 = vrot.slane %v814, 1
      %v858 = vrot.slane %v541, 1
      %v859 = vsel %vm817, %v857, %v858
      %v860 = vrot.slane %v815, 1
      %v861 = vrot.slane %v542, 1
      %v862 = vsel %vm817, %v860, %v861
      %v863 = vrot.slane %v816, 1
      %v864 = vrot.slane %v543, 1
      %v865 = vsel %vm817, %v863, %v864
      %866 = vrot.lane.b32.xlu0 %v820, 8
      %v867 = vpop.permute.xlu0 %866
      %868 = vrot.lane.b32.xlu0 %v823, 8
      %v869 = vpop.permute.xlu0 %868
      %870 = vrot.lane.b32.xlu0 %v826, 8
      %v871 = vpop.permute.xlu0 %870
      %872 = vrot.lane.b32.xlu0 %v829, 8
      %v873 = vpop.permute.xlu0 %872
      %874 = vrot.lane.b32.xlu0 %v832, 8
      %v875 = vpop.permute.xlu0 %874
      %876 = vrot.lane.b32.xlu0 %v835, 8
      %v877 = vpop.permute.xlu0 %876
      %878 = vrot.lane.b32.xlu0 %v838, 8
      %v879 = vpop.permute.xlu0 %878
      %880 = vrot.lane.b32.xlu0 %v841, 8
      %v881 = vpop.permute.xlu0 %880
      %882 = vrot.lane.b32.xlu0 %v844, 8
      %v883 = vpop.permute.xlu0 %882
      %884 = vrot.lane.b32.xlu0 %v847, 8
      %v885 = vpop.permute.xlu0 %884
      %886 = vrot.lane.b32.xlu0 %v850, 8
      %v887 = vpop.permute.xlu0 %886
      %888 = vrot.lane.b32.xlu0 %v853, 8
      %v889 = vpop.permute.xlu0 %888
      %890 = vrot.lane.b32.xlu0 %v856, 8
      %v891 = vpop.permute.xlu0 %890
      %892 = vrot.lane.b32.xlu0 %v859, 8
      %v893 = vpop.permute.xlu0 %892
      %894 = vrot.lane.b32.xlu0 %v862, 8
      %v895 = vpop.permute.xlu0 %894
      %896 = vrot.lane.b32.xlu0 %v865, 8
      %v897 = vpop.permute.xlu0 %896
      %v930 = vunpack.c.l.b16 %v284
      %v931 = vunpack.c.l.b16 %v285
      %v932 = vunpack.c.l.b16 %v286
      %v933 = vunpack.c.l.b16 %v287
      %v934 = vunpack.c.l.b16 %v288
      %v935 = vunpack.c.l.b16 %v289
      %v936 = vunpack.c.l.b16 %v290
      %v937 = vunpack.c.l.b16 %v291
      %v938 = vunpack.c.l.b16 %v292
      %v939 = vunpack.c.l.b16 %v293
      %v940 = vunpack.c.l.b16 %v294
      %v941 = vunpack.c.l.b16 %v295
      %v942 = vunpack.c.l.b16 %v296
      %v943 = vunpack.c.l.b16 %v297
      %v944 = vunpack.c.l.b16 %v298
      %v945 = vunpack.c.l.b16 %v299
      %v946 = vunpack.c.l.b16 %v300
      %v947 = vunpack.c.l.b16 %v301
      %v948 = vunpack.c.l.b16 %v302
      %v949 = vunpack.c.l.b16 %v303
      %v950 = vunpack.c.l.b16 %v304
      %v951 = vunpack.c.l.b16 %v305
      %v952 = vunpack.c.l.b16 %v306
      %v953 = vunpack.c.l.b16 %v307
      %v954 = vunpack.c.l.b16 %v308
      %v955 = vunpack.c.l.b16 %v309
      %v956 = vunpack.c.l.b16 %v310
      %v957 = vunpack.c.l.b16 %v311
      %v958 = vunpack.c.l.b16 %v312
      %v959 = vunpack.c.l.b16 %v313
      %v960 = vunpack.c.l.b16 %v314
      %v961 = vunpack.c.l.b16 %v315
      %v962 = vpack.c.b16 %v931, %v930
      %v963 = vpack.c.b16 %v933, %v932
      %v964 = vpack.c.b16 %v935, %v934
      %v965 = vpack.c.b16 %v937, %v936
      %v966 = vpack.c.b16 %v939, %v938
      %v967 = vpack.c.b16 %v941, %v940
      %v968 = vpack.c.b16 %v943, %v942
      %v969 = vpack.c.b16 %v945, %v944
      %v970 = vpack.c.b16 %v947, %v946
      %v971 = vpack.c.b16 %v949, %v948
      %v972 = vpack.c.b16 %v951, %v950
      %v973 = vpack.c.b16 %v953, %v952
      %v974 = vpack.c.b16 %v955, %v954
      %v975 = vpack.c.b16 %v957, %v956
      %v976 = vpack.c.b16 %v959, %v958
      %v977 = vpack.c.b16 %v961, %v960
      %978 = vrot.lane.b32.xlu0 %v962, 12
      %v979 = vpop.permute.xlu0 %978
      %980 = vrot.lane.b32.xlu0 %v963, 12
      %v981 = vpop.permute.xlu0 %980
      %982 = vrot.lane.b32.xlu0 %v964, 12
      %v983 = vpop.permute.xlu0 %982
      %984 = vrot.lane.b32.xlu0 %v965, 12
      %v985 = vpop.permute.xlu0 %984
      %986 = vrot.lane.b32.xlu0 %v966, 12
      %v987 = vpop.permute.xlu0 %986
      %988 = vrot.lane.b32.xlu0 %v967, 12
      %v989 = vpop.permute.xlu0 %988
      %990 = vrot.lane.b32.xlu0 %v968, 12
      %v991 = vpop.permute.xlu0 %990
      %992 = vrot.lane.b32.xlu0 %v969, 12
      %v993 = vpop.permute.xlu0 %992
      %994 = vrot.lane.b32.xlu0 %v970, 12
      %v995 = vpop.permute.xlu0 %994
      %996 = vrot.lane.b32.xlu0 %v971, 12
      %v997 = vpop.permute.xlu0 %996
      %998 = vrot.lane.b32.xlu0 %v972, 12
      %v999 = vpop.permute.xlu0 %998
      %1000 = vrot.lane.b32.xlu0 %v973, 12
      %v1001 = vpop.permute.xlu0 %1000
      %1002 = vrot.lane.b32.xlu0 %v974, 12
      %v1003 = vpop.permute.xlu0 %1002
      %1004 = vrot.lane.b32.xlu0 %v975, 12
      %v1005 = vpop.permute.xlu0 %1004
      %1006 = vrot.lane.b32.xlu0 %v976, 12
      %v1007 = vpop.permute.xlu0 %1006
      %1008 = vrot.lane.b32.xlu0 %v977, 12
      %v1009 = vpop.permute.xlu0 %1008
      %v1026 = vunpack.c.l.b16 %v316
      %v1027 = vunpack.c.l.b16 %v317
      %v1028 = vunpack.c.l.b16 %v318
      %v1029 = vunpack.c.l.b16 %v319
      %v1030 = vunpack.c.l.b16 %v320
      %v1031 = vunpack.c.l.b16 %v321
      %v1032 = vunpack.c.l.b16 %v322
      %v1033 = vunpack.c.l.b16 %v323
      %v1034 = vunpack.c.l.b16 %v324
      %v1035 = vunpack.c.l.b16 %v325
      %v1036 = vunpack.c.l.b16 %v326
      %v1037 = vunpack.c.l.b16 %v327
      %v1038 = vunpack.c.l.b16 %v328
      %v1039 = vunpack.c.l.b16 %v329
      %v1040 = vunpack.c.l.b16 %v330
      %v1041 = vunpack.c.l.b16 %v331
      %v1042 = vpack.c.b16 %v1026, %v1026
      %v1043 = vpack.c.b16 %v1027, %v1027
      %v1044 = vpack.c.b16 %v1028, %v1028
      %v1045 = vpack.c.b16 %v1029, %v1029
      %v1046 = vpack.c.b16 %v1030, %v1030
      %v1047 = vpack.c.b16 %v1031, %v1031
      %v1048 = vpack.c.b16 %v1032, %v1032
      %v1049 = vpack.c.b16 %v1033, %v1033
      %v1050 = vpack.c.b16 %v1034, %v1034
      %v1051 = vpack.c.b16 %v1035, %v1035
      %v1052 = vpack.c.b16 %v1036, %v1036
      %v1053 = vpack.c.b16 %v1037, %v1037
      %v1054 = vpack.c.b16 %v1038, %v1038
      %v1055 = vpack.c.b16 %v1039, %v1039
      %v1056 = vpack.c.b16 %v1040, %v1040
      %v1057 = vpack.c.b16 %v1041, %v1041
      %v1059 = vshrl.u32 %v962, 16
      %v1061 = vshll.u32 %v962, 16
      %v1063 = vrot.slane %v1061, 1
      %v1064 = vor.u32 %v1059, %v1063
      %v1066 = vshll.u32 %v1042, 16
      %v1068 = vrot.slane %v1066, 1
      %v1069 = vsel %vm544, %v1064, %v1068
      %v1071 = vshrl.u32 %v963, 16
      %v1073 = vshll.u32 %v963, 16
      %v1075 = vrot.slane %v1073, 1
      %v1076 = vor.u32 %v1071, %v1075
      %v1078 = vshll.u32 %v1043, 16
      %v1080 = vrot.slane %v1078, 1
      %v1081 = vsel %vm544, %v1076, %v1080
      %v1083 = vshrl.u32 %v964, 16
      %v1085 = vshll.u32 %v964, 16
      %v1087 = vrot.slane %v1085, 1
      %v1088 = vor.u32 %v1083, %v1087
      %v1090 = vshll.u32 %v1044, 16
      %v1092 = vrot.slane %v1090, 1
      %v1093 = vsel %vm544, %v1088, %v1092
      %v1095 = vshrl.u32 %v965, 16
      %v1097 = vshll.u32 %v965, 16
      %v1099 = vrot.slane %v1097, 1
      %v1100 = vor.u32 %v1095, %v1099
      %v1102 = vshll.u32 %v1045, 16
      %v1104 = vrot.slane %v1102, 1
      %v1105 = vsel %vm544, %v1100, %v1104
      %v1107 = vshrl.u32 %v966, 16
      %v1109 = vshll.u32 %v966, 16
      %v1111 = vrot.slane %v1109, 1
      %v1112 = vor.u32 %v1107, %v1111
      %v1114 = vshll.u32 %v1046, 16
      %v1116 = vrot.slane %v1114, 1
      %v1117 = vsel %vm544, %v1112, %v1116
      %v1119 = vshrl.u32 %v967, 16
      %v1121 = vshll.u32 %v967, 16
      %v1123 = vrot.slane %v1121, 1
      %v1124 = vor.u32 %v1119, %v1123
      %v1126 = vshll.u32 %v1047, 16
      %v1128 = vrot.slane %v1126, 1
      %v1129 = vsel %vm544, %v1124, %v1128
      %v1131 = vshrl.u32 %v968, 16
      %v1133 = vshll.u32 %v968, 16
      %v1135 = vrot.slane %v1133, 1
      %v1136 = vor.u32 %v1131, %v1135
      %v1138 = vshll.u32 %v1048, 16
      %v1140 = vrot.slane %v1138, 1
      %v1141 = vsel %vm544, %v1136, %v1140
      %v1143 = vshrl.u32 %v969, 16
      %v1145 = vshll.u32 %v969, 16
      %v1147 = vrot.slane %v1145, 1
      %v1148 = vor.u32 %v1143, %v1147
      %v1150 = vshll.u32 %v1049, 16
      %v1152 = vrot.slane %v1150, 1
      %v1153 = vsel %vm544, %v1148, %v1152
      %v1155 = vshrl.u32 %v970, 16
      %v1157 = vshll.u32 %v970, 16
      %v1159 = vrot.slane %v1157, 1
      %v1160 = vor.u32 %v1155, %v1159
      %v1162 = vshll.u32 %v1050, 16
      %v1164 = vrot.slane %v1162, 1
      %v1165 = vsel %vm544, %v1160, %v1164
      %v1167 = vshrl.u32 %v971, 16
      %v1169 = vshll.u32 %v971, 16
      %v1171 = vrot.slane %v1169, 1
      %v1172 = vor.u32 %v1167, %v1171
      %v1174 = vshll.u32 %v1051, 16
      %v1176 = vrot.slane %v1174, 1
      %v1177 = vsel %vm544, %v1172, %v1176
      %v1179 = vshrl.u32 %v972, 16
      %v1181 = vshll.u32 %v972, 16
      %v1183 = vrot.slane %v1181, 1
      %v1184 = vor.u32 %v1179, %v1183
      %v1186 = vshll.u32 %v1052, 16
      %v1188 = vrot.slane %v1186, 1
      %v1189 = vsel %vm544, %v1184, %v1188
      %v1191 = vshrl.u32 %v973, 16
      %v1193 = vshll.u32 %v973, 16
      %v1195 = vrot.slane %v1193, 1
      %v1196 = vor.u32 %v1191, %v1195
      %v1198 = vshll.u32 %v1053, 16
      %v1200 = vrot.slane %v1198, 1
      %v1201 = vsel %vm544, %v1196, %v1200
      %v1203 = vshrl.u32 %v974, 16
      %v1205 = vshll.u32 %v974, 16
      %v1207 = vrot.slane %v1205, 1
      %v1208 = vor.u32 %v1203, %v1207
      %v1210 = vshll.u32 %v1054, 16
      %v1212 = vrot.slane %v1210, 1
      %v1213 = vsel %vm544, %v1208, %v1212
      %v1215 = vshrl.u32 %v975, 16
      %v1217 = vshll.u32 %v975, 16
      %v1219 = vrot.slane %v1217, 1
      %v1220 = vor.u32 %v1215, %v1219
      %v1222 = vshll.u32 %v1055, 16
      %v1224 = vrot.slane %v1222, 1
      %v1225 = vsel %vm544, %v1220, %v1224
      %v1227 = vshrl.u32 %v976, 16
      %v1229 = vshll.u32 %v976, 16
      %v1231 = vrot.slane %v1229, 1
      %v1232 = vor.u32 %v1227, %v1231
      %v1234 = vshll.u32 %v1056, 16
      %v1236 = vrot.slane %v1234, 1
      %v1237 = vsel %vm544, %v1232, %v1236
      %v1239 = vshrl.u32 %v977, 16
      %v1241 = vshll.u32 %v977, 16
      %v1243 = vrot.slane %v1241, 1
      %v1244 = vor.u32 %v1239, %v1243
      %v1246 = vshll.u32 %v1057, 16
      %v1248 = vrot.slane %v1246, 1
      %v1249 = vsel %vm544, %v1244, %v1248
      %1250 = vrot.lane.b32.xlu0 %v1069, 16
      %v1251 = vpop.permute.xlu0 %1250
      %1252 = vrot.lane.b32.xlu0 %v1081, 16
      %v1253 = vpop.permute.xlu0 %1252
      %1254 = vrot.lane.b32.xlu0 %v1093, 16
      %v1255 = vpop.permute.xlu0 %1254
      %1256 = vrot.lane.b32.xlu0 %v1105, 16
      %v1257 = vpop.permute.xlu0 %1256
      %1258 = vrot.lane.b32.xlu0 %v1117, 16
      %v1259 = vpop.permute.xlu0 %1258
      %1260 = vrot.lane.b32.xlu0 %v1129, 16
      %v1261 = vpop.permute.xlu0 %1260
      %1262 = vrot.lane.b32.xlu0 %v1141, 16
      %v1263 = vpop.permute.xlu0 %1262
      %1264 = vrot.lane.b32.xlu0 %v1153, 16
      %v1265 = vpop.permute.xlu0 %1264
      %1266 = vrot.lane.b32.xlu0 %v1165, 16
      %v1267 = vpop.permute.xlu0 %1266
      %1268 = vrot.lane.b32.xlu0 %v1177, 16
      %v1269 = vpop.permute.xlu0 %1268
      %1270 = vrot.lane.b32.xlu0 %v1189, 16
      %v1271 = vpop.permute.xlu0 %1270
      %1272 = vrot.lane.b32.xlu0 %v1201, 16
      %v1273 = vpop.permute.xlu0 %1272
      %1274 = vrot.lane.b32.xlu0 %v1213, 16
      %v1275 = vpop.permute.xlu0 %1274
      %1276 = vrot.lane.b32.xlu0 %v1225, 16
      %v1277 = vpop.permute.xlu0 %1276
      %1278 = vrot.lane.b32.xlu0 %v1237, 16
      %v1279 = vpop.permute.xlu0 %1278
      %1280 = vrot.lane.b32.xlu0 %v1249, 16
      %v1281 = vpop.permute.xlu0 %1280
      %v1298 = vunpack.c.l.b16 %v332
      %v1299 = vunpack.c.l.b16 %v333
      %v1300 = vunpack.c.l.b16 %v334
      %v1301 = vunpack.c.l.b16 %v335
      %v1302 = vunpack.c.l.b16 %v336
      %v1303 = vunpack.c.l.b16 %v337
      %v1304 = vunpack.c.l.b16 %v338
      %v1305 = vunpack.c.l.b16 %v339
      %v1306 = vunpack.c.l.b16 %v340
      %v1307 = vunpack.c.l.b16 %v341
      %v1308 = vunpack.c.l.b16 %v342
      %v1309 = vunpack.c.l.b16 %v343
      %v1310 = vunpack.c.l.b16 %v344
      %v1311 = vunpack.c.l.b16 %v345
      %v1312 = vunpack.c.l.b16 %v346
      %v1313 = vunpack.c.l.b16 %v347
      %v1314 = vpack.c.b16 %v931, %v1298
      %v1315 = vpack.c.b16 %v933, %v1299
      %v1316 = vpack.c.b16 %v935, %v1300
      %v1317 = vpack.c.b16 %v937, %v1301
      %v1318 = vpack.c.b16 %v939, %v1302
      %v1319 = vpack.c.b16 %v941, %v1303
      %v1320 = vpack.c.b16 %v943, %v1304
      %v1321 = vpack.c.b16 %v945, %v1305
      %v1322 = vpack.c.b16 %v947, %v1306
      %v1323 = vpack.c.b16 %v949, %v1307
      %v1324 = vpack.c.b16 %v951, %v1308
      %v1325 = vpack.c.b16 %v953, %v1309
      %v1326 = vpack.c.b16 %v955, %v1310
      %v1327 = vpack.c.b16 %v957, %v1311
      %v1328 = vpack.c.b16 %v959, %v1312
      %v1329 = vpack.c.b16 %v961, %v1313
      %v1330 = vrot.slane %v1314, 1
      %v1331 = vrot.slane %v1042, 1
      %v1332 = vsel %vm817, %v1330, %v1331
      %v1333 = vrot.slane %v1315, 1
      %v1334 = vrot.slane %v1043, 1
      %v1335 = vsel %vm817, %v1333, %v1334
      %v1336 = vrot.slane %v1316, 1
      %v1337 = vrot.slane %v1044, 1
      %v1338 = vsel %vm817, %v1336, %v1337
      %v1339 = vrot.slane %v1317, 1
      %v1340 = vrot.slane %v1045, 1
      %v1341 = vsel %vm817, %v1339, %v1340
      %v1342 = vrot.slane %v1318, 1
      %v1343 = vrot.slane %v1046, 1
      %v1344 = vsel %vm817, %v1342, %v1343
      %v1345 = vrot.slane %v1319, 1
      %v1346 = vrot.slane %v1047, 1
      %v1347 = vsel %vm817, %v1345, %v1346
      %v1348 = vrot.slane %v1320, 1
      %v1349 = vrot.slane %v1048, 1
      %v1350 = vsel %vm817, %v1348, %v1349
      %v1351 = vrot.slane %v1321, 1
      %v1352 = vrot.slane %v1049, 1
      %v1353 = vsel %vm817, %v1351, %v1352
      %v1354 = vrot.slane %v1322, 1
      %v1355 = vrot.slane %v1050, 1
      %v1356 = vsel %vm817, %v1354, %v1355
      %v1357 = vrot.slane %v1323, 1
      %v1358 = vrot.slane %v1051, 1
      %v1359 = vsel %vm817, %v1357, %v1358
      %v1360 = vrot.slane %v1324, 1
      %v1361 = vrot.slane %v1052, 1
      %v1362 = vsel %vm817, %v1360, %v1361
      %v1363 = vrot.slane %v1325, 1
      %v1364 = vrot.slane %v1053, 1
      %v1365 = vsel %vm817, %v1363, %v1364
      %v1366 = vrot.slane %v1326, 1
      %v1367 = vrot.slane %v1054, 1
      %v1368 = vsel %vm817, %v1366, %v1367
      %v1369 = vrot.slane %v1327, 1
      %v1370 = vrot.slane %v1055, 1
      %v1371 = vsel %vm817, %v1369, %v1370
      %v1372 = vrot.slane %v1328, 1
      %v1373 = vrot.slane %v1056, 1
      %v1374 = vsel %vm817, %v1372, %v1373
      %v1375 = vrot.slane %v1329, 1
      %v1376 = vrot.slane %v1057, 1
      %v1377 = vsel %vm817, %v1375, %v1376
      %1378 = vrot.lane.b32.xlu0 %v1332, 20
      %v1379 = vpop.permute.xlu0 %1378
      %1380 = vrot.lane.b32.xlu0 %v1335, 20
      %v1381 = vpop.permute.xlu0 %1380
      %1382 = vrot.lane.b32.xlu0 %v1338, 20
      %v1383 = vpop.permute.xlu0 %1382
      %1384 = vrot.lane.b32.xlu0 %v1341, 20
      %v1385 = vpop.permute.xlu0 %1384
      %1386 = vrot.lane.b32.xlu0 %v1344, 20
      %v1387 = vpop.permute.xlu0 %1386
      %1388 = vrot.lane.b32.xlu0 %v1347, 20
      %v1389 = vpop.permute.xlu0 %1388
      %1390 = vrot.lane.b32.xlu0 %v1350, 20
      %v1391 = vpop.permute.xlu0 %1390
      %1392 = vrot.lane.b32.xlu0 %v1353, 20
      %v1393 = vpop.permute.xlu0 %1392
      %1394 = vrot.lane.b32.xlu0 %v1356, 20
      %v1395 = vpop.permute.xlu0 %1394
      %1396 = vrot.lane.b32.xlu0 %v1359, 20
      %v1397 = vpop.permute.xlu0 %1396
      %1398 = vrot.lane.b32.xlu0 %v1362, 20
      %v1399 = vpop.permute.xlu0 %1398
      %1400 = vrot.lane.b32.xlu0 %v1365, 20
      %v1401 = vpop.permute.xlu0 %1400
      %1402 = vrot.lane.b32.xlu0 %v1368, 20
      %v1403 = vpop.permute.xlu0 %1402
      %1404 = vrot.lane.b32.xlu0 %v1371, 20
      %v1405 = vpop.permute.xlu0 %1404
      %1406 = vrot.lane.b32.xlu0 %v1374, 20
      %v1407 = vpop.permute.xlu0 %1406
      %1408 = vrot.lane.b32.xlu0 %v1377, 20
      %v1409 = vpop.permute.xlu0 %1408
      %v1442 = vunpack.c.l.b16 %v352
      %v1443 = vunpack.c.l.b16 %v353
      %v1444 = vunpack.c.l.b16 %v354
      %v1445 = vunpack.c.l.b16 %v355
      %v1446 = vunpack.c.l.b16 %v356
      %v1447 = vunpack.c.l.b16 %v357
      %v1448 = vunpack.c.l.b16 %v358
      %v1449 = vunpack.c.l.b16 %v359
      %v1450 = vunpack.c.l.b16 %v360
      %v1451 = vunpack.c.l.b16 %v361
      %v1452 = vunpack.c.l.b16 %v362
      %v1453 = vunpack.c.l.b16 %v363
      %v1454 = vunpack.c.l.b16 %v364
      %v1455 = vunpack.c.l.b16 %v365
      %v1456 = vunpack.c.l.b16 %v366
      %v1457 = vunpack.c.l.b16 %v367
      %v1458 = vunpack.c.l.b16 %v368
      %v1459 = vunpack.c.l.b16 %v369
      %v1460 = vunpack.c.l.b16 %v370
      %v1461 = vunpack.c.l.b16 %v371
      %v1462 = vunpack.c.l.b16 %v372
      %v1463 = vunpack.c.l.b16 %v373
      %v1464 = vunpack.c.l.b16 %v374
      %v1465 = vunpack.c.l.b16 %v375
      %v1466 = vunpack.c.l.b16 %v376
      %v1467 = vunpack.c.l.b16 %v377
      %v1468 = vunpack.c.l.b16 %v378
      %v1469 = vunpack.c.l.b16 %v379
      %v1470 = vunpack.c.l.b16 %v380
      %v1471 = vunpack.c.l.b16 %v381
      %v1472 = vunpack.c.l.b16 %v382
      %v1473 = vunpack.c.l.b16 %v383
      %v1474 = vpack.c.b16 %v1443, %v1442
      %v1475 = vpack.c.b16 %v1445, %v1444
      %v1476 = vpack.c.b16 %v1447, %v1446
      %v1477 = vpack.c.b16 %v1449, %v1448
      %v1478 = vpack.c.b16 %v1451, %v1450
      %v1479 = vpack.c.b16 %v1453, %v1452
      %v1480 = vpack.c.b16 %v1455, %v1454
      %v1481 = vpack.c.b16 %v1457, %v1456
      %v1482 = vpack.c.b16 %v1459, %v1458
      %v1483 = vpack.c.b16 %v1461, %v1460
      %v1484 = vpack.c.b16 %v1463, %v1462
      %v1485 = vpack.c.b16 %v1465, %v1464
      %v1486 = vpack.c.b16 %v1467, %v1466
      %v1487 = vpack.c.b16 %v1469, %v1468
      %v1488 = vpack.c.b16 %v1471, %v1470
      %v1489 = vpack.c.b16 %v1473, %v1472
      %1490 = vrot.lane.b32.xlu0 %v1474, 24
      %v1491 = vpop.permute.xlu0 %1490
      %1492 = vrot.lane.b32.xlu0 %v1475, 24
      %v1493 = vpop.permute.xlu0 %1492
      %1494 = vrot.lane.b32.xlu0 %v1476, 24
      %v1495 = vpop.permute.xlu0 %1494
      %1496 = vrot.lane.b32.xlu0 %v1477, 24
      %v1497 = vpop.permute.xlu0 %1496
      %1498 = vrot.lane.b32.xlu0 %v1478, 24
      %v1499 = vpop.permute.xlu0 %1498
      %1500 = vrot.lane.b32.xlu0 %v1479, 24
      %v1501 = vpop.permute.xlu0 %1500
      %1502 = vrot.lane.b32.xlu0 %v1480, 24
      %v1503 = vpop.permute.xlu0 %1502
      %1504 = vrot.lane.b32.xlu0 %v1481, 24
      %v1505 = vpop.permute.xlu0 %1504
      %1506 = vrot.lane.b32.xlu0 %v1482, 24
      %v1507 = vpop.permute.xlu0 %1506
      %1508 = vrot.lane.b32.xlu0 %v1483, 24
      %v1509 = vpop.permute.xlu0 %1508
      %1510 = vrot.lane.b32.xlu0 %v1484, 24
      %v1511 = vpop.permute.xlu0 %1510
      %1512 = vrot.lane.b32.xlu0 %v1485, 24
      %v1513 = vpop.permute.xlu0 %1512
      %1514 = vrot.lane.b32.xlu0 %v1486, 24
      %v1515 = vpop.permute.xlu0 %1514
      %1516 = vrot.lane.b32.xlu0 %v1487, 24
      %v1517 = vpop.permute.xlu0 %1516
      %1518 = vrot.lane.b32.xlu0 %v1488, 24
      %v1519 = vpop.permute.xlu0 %1518
      %1520 = vrot.lane.b32.xlu0 %v1489, 24
      %v1521 = vpop.permute.xlu0 %1520
      %v1538 = vunpack.c.l.b16 %v384
      %v1539 = vunpack.c.l.b16 %v385
      %v1540 = vunpack.c.l.b16 %v386
      %v1541 = vunpack.c.l.b16 %v387
      %v1542 = vunpack.c.l.b16 %v388
      %v1543 = vunpack.c.l.b16 %v389
      %v1544 = vunpack.c.l.b16 %v390
      %v1545 = vunpack.c.l.b16 %v391
      %v1546 = vunpack.c.l.b16 %v392
      %v1547 = vunpack.c.l.b16 %v393
      %v1548 = vunpack.c.l.b16 %v394
      %v1549 = vunpack.c.l.b16 %v395
      %v1550 = vunpack.c.l.b16 %v396
      %v1551 = vunpack.c.l.b16 %v397
      %v1552 = vunpack.c.l.b16 %v398
      %v1553 = vunpack.c.l.b16 %v399
      %v1554 = vpack.c.b16 %v1538, %v1538
      %v1555 = vpack.c.b16 %v1539, %v1539
      %v1556 = vpack.c.b16 %v1540, %v1540
      %v1557 = vpack.c.b16 %v1541, %v1541
      %v1558 = vpack.c.b16 %v1542, %v1542
      %v1559 = vpack.c.b16 %v1543, %v1543
      %v1560 = vpack.c.b16 %v1544, %v1544
      %v1561 = vpack.c.b16 %v1545, %v1545
      %v1562 = vpack.c.b16 %v1546, %v1546
      %v1563 = vpack.c.b16 %v1547, %v1547
      %v1564 = vpack.c.b16 %v1548, %v1548
      %v1565 = vpack.c.b16 %v1549, %v1549
      %v1566 = vpack.c.b16 %v1550, %v1550
      %v1567 = vpack.c.b16 %v1551, %v1551
      %v1568 = vpack.c.b16 %v1552, %v1552
      %v1569 = vpack.c.b16 %v1553, %v1553
      %v1571 = vshrl.u32 %v1474, 16
      %v1573 = vshll.u32 %v1474, 16
      %v1575 = vrot.slane %v1573, 1
      %v1576 = vor.u32 %v1571, %v1575
      %v1578 = vshll.u32 %v1554, 16
      %v1580 = vrot.slane %v1578, 1
      %v1581 = vsel %vm544, %v1576, %v1580
      %v1583 = vshrl.u32 %v1475, 16
      %v1585 = vshll.u32 %v1475, 16
      %v1587 = vrot.slane %v1585, 1
      %v1588 = vor.u32 %v1583, %v1587
      %v1590 = vshll.u32 %v1555, 16
      %v1592 = vrot.slane %v1590, 1
      %v1593 = vsel %vm544, %v1588, %v1592
      %v1595 = vshrl.u32 %v1476, 16
      %v1597 = vshll.u32 %v1476, 16
      %v1599 = vrot.slane %v1597, 1
      %v1600 = vor.u32 %v1595, %v1599
      %v1602 = vshll.u32 %v1556, 16
      %v1604 = vrot.slane %v1602, 1
      %v1605 = vsel %vm544, %v1600, %v1604
      %v1607 = vshrl.u32 %v1477, 16
      %v1609 = vshll.u32 %v1477, 16
      %v1611 = vrot.slane %v1609, 1
      %v1612 = vor.u32 %v1607, %v1611
      %v1614 = vshll.u32 %v1557, 16
      %v1616 = vrot.slane %v1614, 1
      %v1617 = vsel %vm544, %v1612, %v1616
      %v1619 = vshrl.u32 %v1478, 16
      %v1621 = vshll.u32 %v1478, 16
      %v1623 = vrot.slane %v1621, 1
      %v1624 = vor.u32 %v1619, %v1623
      %v1626 = vshll.u32 %v1558, 16
      %v1628 = vrot.slane %v1626, 1
      %v1629 = vsel %vm544, %v1624, %v1628
      %v1631 = vshrl.u32 %v1479, 16
      %v1633 = vshll.u32 %v1479, 16
      %v1635 = vrot.slane %v1633, 1
      %v1636 = vor.u32 %v1631, %v1635
      %v1638 = vshll.u32 %v1559, 16
      %v1640 = vrot.slane %v1638, 1
      %v1641 = vsel %vm544, %v1636, %v1640
      %v1643 = vshrl.u32 %v1480, 16
      %v1645 = vshll.u32 %v1480, 16
      %v1647 = vrot.slane %v1645, 1
      %v1648 = vor.u32 %v1643, %v1647
      %v1650 = vshll.u32 %v1560, 16
      %v1652 = vrot.slane %v1650, 1
      %v1653 = vsel %vm544, %v1648, %v1652
      %v1655 = vshrl.u32 %v1481, 16
      %v1657 = vshll.u32 %v1481, 16
      %v1659 = vrot.slane %v1657, 1
      %v1660 = vor.u32 %v1655, %v1659
      %v1662 = vshll.u32 %v1561, 16
      %v1664 = vrot.slane %v1662, 1
      %v1665 = vsel %vm544, %v1660, %v1664
      %v1667 = vshrl.u32 %v1482, 16
      %v1669 = vshll.u32 %v1482, 16
      %v1671 = vrot.slane %v1669, 1
      %v1672 = vor.u32 %v1667, %v1671
      %v1674 = vshll.u32 %v1562, 16
      %v1676 = vrot.slane %v1674, 1
      %v1677 = vsel %vm544, %v1672, %v1676
      %v1679 = vshrl.u32 %v1483, 16
      %v1681 = vshll.u32 %v1483, 16
      %v1683 = vrot.slane %v1681, 1
      %v1684 = vor.u32 %v1679, %v1683
      %v1686 = vshll.u32 %v1563, 16
      %v1688 = vrot.slane %v1686, 1
      %v1689 = vsel %vm544, %v1684, %v1688
      %v1691 = vshrl.u32 %v1484, 16
      %v1693 = vshll.u32 %v1484, 16
      %v1695 = vrot.slane %v1693, 1
      %v1696 = vor.u32 %v1691, %v1695
      %v1698 = vshll.u32 %v1564, 16
      %v1700 = vrot.slane %v1698, 1
      %v1701 = vsel %vm544, %v1696, %v1700
      %v1703 = vshrl.u32 %v1485, 16
      %v1705 = vshll.u32 %v1485, 16
      %v1707 = vrot.slane %v1705, 1
      %v1708 = vor.u32 %v1703, %v1707
      %v1710 = vshll.u32 %v1565, 16
      %v1712 = vrot.slane %v1710, 1
      %v1713 = vsel %vm544, %v1708, %v1712
      %v1715 = vshrl.u32 %v1486, 16
      %v1717 = vshll.u32 %v1486, 16
      %v1719 = vrot.slane %v1717, 1
      %v1720 = vor.u32 %v1715, %v1719
      %v1722 = vshll.u32 %v1566, 16
      %v1724 = vrot.slane %v1722, 1
      %v1725 = vsel %vm544, %v1720, %v1724
      %v1727 = vshrl.u32 %v1487, 16
      %v1729 = vshll.u32 %v1487, 16
      %v1731 = vrot.slane %v1729, 1
      %v1732 = vor.u32 %v1727, %v1731
      %v1734 = vshll.u32 %v1567, 16
      %v1736 = vrot.slane %v1734, 1
      %v1737 = vsel %vm544, %v1732, %v1736
      %v1739 = vshrl.u32 %v1488, 16
      %v1741 = vshll.u32 %v1488, 16
      %v1743 = vrot.slane %v1741, 1
      %v1744 = vor.u32 %v1739, %v1743
      %v1746 = vshll.u32 %v1568, 16
      %v1748 = vrot.slane %v1746, 1
      %v1749 = vsel %vm544, %v1744, %v1748
      %v1751 = vshrl.u32 %v1489, 16
      %v1753 = vshll.u32 %v1489, 16
      %v1755 = vrot.slane %v1753, 1
      %v1756 = vor.u32 %v1751, %v1755
      %v1758 = vshll.u32 %v1569, 16
      %v1760 = vrot.slane %v1758, 1
      %v1761 = vsel %vm544, %v1756, %v1760
      %1762 = vrot.lane.b32.xlu0 %v1581, 28
      %v1763 = vpop.permute.xlu0 %1762
      %1764 = vrot.lane.b32.xlu0 %v1593, 28
      %v1765 = vpop.permute.xlu0 %1764
      %1766 = vrot.lane.b32.xlu0 %v1605, 28
      %v1767 = vpop.permute.xlu0 %1766
      %1768 = vrot.lane.b32.xlu0 %v1617, 28
      %v1769 = vpop.permute.xlu0 %1768
      %1770 = vrot.lane.b32.xlu0 %v1629, 28
      %v1771 = vpop.permute.xlu0 %1770
      %1772 = vrot.lane.b32.xlu0 %v1641, 28
      %v1773 = vpop.permute.xlu0 %1772
      %1774 = vrot.lane.b32.xlu0 %v1653, 28
      %v1775 = vpop.permute.xlu0 %1774
      %1776 = vrot.lane.b32.xlu0 %v1665, 28
      %v1777 = vpop.permute.xlu0 %1776
      %1778 = vrot.lane.b32.xlu0 %v1677, 28
      %v1779 = vpop.permute.xlu0 %1778
      %1780 = vrot.lane.b32.xlu0 %v1689, 28
      %v1781 = vpop.permute.xlu0 %1780
      %1782 = vrot.lane.b32.xlu0 %v1701, 28
      %v1783 = vpop.permute.xlu0 %1782
      %1784 = vrot.lane.b32.xlu0 %v1713, 28
      %v1785 = vpop.permute.xlu0 %1784
      %1786 = vrot.lane.b32.xlu0 %v1725, 28
      %v1787 = vpop.permute.xlu0 %1786
      %1788 = vrot.lane.b32.xlu0 %v1737, 28
      %v1789 = vpop.permute.xlu0 %1788
      %1790 = vrot.lane.b32.xlu0 %v1749, 28
      %v1791 = vpop.permute.xlu0 %1790
      %1792 = vrot.lane.b32.xlu0 %v1761, 28
      %v1793 = vpop.permute.xlu0 %1792
      %v1810 = vunpack.c.l.b16 %v400
      %v1811 = vunpack.c.l.b16 %v401
      %v1812 = vunpack.c.l.b16 %v402
      %v1813 = vunpack.c.l.b16 %v403
      %v1814 = vunpack.c.l.b16 %v404
      %v1815 = vunpack.c.l.b16 %v405
      %v1816 = vunpack.c.l.b16 %v406
      %v1817 = vunpack.c.l.b16 %v407
      %v1818 = vunpack.c.l.b16 %v408
      %v1819 = vunpack.c.l.b16 %v409
      %v1820 = vunpack.c.l.b16 %v410
      %v1821 = vunpack.c.l.b16 %v411
      %v1822 = vunpack.c.l.b16 %v412
      %v1823 = vunpack.c.l.b16 %v413
      %v1824 = vunpack.c.l.b16 %v414
      %v1825 = vunpack.c.l.b16 %v415
      %v1826 = vpack.c.b16 %v1443, %v1810
      %v1827 = vpack.c.b16 %v1445, %v1811
      %v1828 = vpack.c.b16 %v1447, %v1812
      %v1829 = vpack.c.b16 %v1449, %v1813
      %v1830 = vpack.c.b16 %v1451, %v1814
      %v1831 = vpack.c.b16 %v1453, %v1815
      %v1832 = vpack.c.b16 %v1455, %v1816
      %v1833 = vpack.c.b16 %v1457, %v1817
      %v1834 = vpack.c.b16 %v1459, %v1818
      %v1835 = vpack.c.b16 %v1461, %v1819
      %v1836 = vpack.c.b16 %v1463, %v1820
      %v1837 = vpack.c.b16 %v1465, %v1821
      %v1838 = vpack.c.b16 %v1467, %v1822
      %v1839 = vpack.c.b16 %v1469, %v1823
      %v1840 = vpack.c.b16 %v1471, %v1824
      %v1841 = vpack.c.b16 %v1473, %v1825
      %v1842 = vrot.slane %v1826, 1
      %v1843 = vrot.slane %v1554, 1
      %v1844 = vsel %vm817, %v1842, %v1843
      %v1845 = vrot.slane %v1827, 1
      %v1846 = vrot.slane %v1555, 1
      %v1847 = vsel %vm817, %v1845, %v1846
      %v1848 = vrot.slane %v1828, 1
      %v1849 = vrot.slane %v1556, 1
      %v1850 = vsel %vm817, %v1848, %v1849
      %v1851 = vrot.slane %v1829, 1
      %v1852 = vrot.slane %v1557, 1
      %v1853 = vsel %vm817, %v1851, %v1852
      %v1854 = vrot.slane %v1830, 1
      %v1855 = vrot.slane %v1558, 1
      %v1856 = vsel %vm817, %v1854, %v1855
      %v1857 = vrot.slane %v1831, 1
      %v1858 = vrot.slane %v1559, 1
      %v1859 = vsel %vm817, %v1857, %v1858
      %v1860 = vrot.slane %v1832, 1
      %v1861 = vrot.slane %v1560, 1
      %v1862 = vsel %vm817, %v1860, %v1861
      %v1863 = vrot.slane %v1833, 1
      %v1864 = vrot.slane %v1561, 1
      %v1865 = vsel %vm817, %v1863, %v1864
      %v1866 = vrot.slane %v1834, 1
      %v1867 = vrot.slane %v1562, 1
      %v1868 = vsel %vm817, %v1866, %v1867
      %v1869 = vrot.slane %v1835, 1
      %v1870 = vrot.slane %v1563, 1
      %v1871 = vsel %vm817, %v1869, %v1870
      %v1872 = vrot.slane %v1836, 1
      %v1873 = vrot.slane %v1564, 1
      %v1874 = vsel %vm817, %v1872, %v1873
      %v1875 = vrot.slane %v1837, 1
      %v1876 = vrot.slane %v1565, 1
      %v1877 = vsel %vm817, %v1875, %v1876
      %v1878 = vrot.slane %v1838, 1
      %v1879 = vrot.slane %v1566, 1
      %v1880 = vsel %vm817, %v1878, %v1879
      %v1881 = vrot.slane %v1839, 1
      %v1882 = vrot.slane %v1567, 1
      %v1883 = vsel %vm817, %v1881, %v1882
      %v1884 = vrot.slane %v1840, 1
      %v1885 = vrot.slane %v1568, 1
      %v1886 = vsel %vm817, %v1884, %v1885
      %v1887 = vrot.slane %v1841, 1
      %v1888 = vrot.slane %v1569, 1
      %v1889 = vsel %vm817, %v1887, %v1888
      %1890 = vrot.lane.b32.xlu0 %v1844, 32
      %v1891 = vpop.permute.xlu0 %1890
      %1892 = vrot.lane.b32.xlu0 %v1847, 32
      %v1893 = vpop.permute.xlu0 %1892
      %1894 = vrot.lane.b32.xlu0 %v1850, 32
      %v1895 = vpop.permute.xlu0 %1894
      %1896 = vrot.lane.b32.xlu0 %v1853, 32
      %v1897 = vpop.permute.xlu0 %1896
      %1898 = vrot.lane.b32.xlu0 %v1856, 32
      %v1899 = vpop.permute.xlu0 %1898
      %1900 = vrot.lane.b32.xlu0 %v1859, 32
      %v1901 = vpop.permute.xlu0 %1900
      %1902 = vrot.lane.b32.xlu0 %v1862, 32
      %v1903 = vpop.permute.xlu0 %1902
      %1904 = vrot.lane.b32.xlu0 %v1865, 32
      %v1905 = vpop.permute.xlu0 %1904
      %1906 = vrot.lane.b32.xlu0 %v1868, 32
      %v1907 = vpop.permute.xlu0 %1906
      %1908 = vrot.lane.b32.xlu0 %v1871, 32
      %v1909 = vpop.permute.xlu0 %1908
      %1910 = vrot.lane.b32.xlu0 %v1874, 32
      %v1911 = vpop.permute.xlu0 %1910
      %1912 = vrot.lane.b32.xlu0 %v1877, 32
      %v1913 = vpop.permute.xlu0 %1912
      %1914 = vrot.lane.b32.xlu0 %v1880, 32
      %v1915 = vpop.permute.xlu0 %1914
      %1916 = vrot.lane.b32.xlu0 %v1883, 32
      %v1917 = vpop.permute.xlu0 %1916
      %1918 = vrot.lane.b32.xlu0 %v1886, 32
      %v1919 = vpop.permute.xlu0 %1918
      %1920 = vrot.lane.b32.xlu0 %v1889, 32
      %v1921 = vpop.permute.xlu0 %1920
      %vm1922 = vcmask 31744
      %v1924 = vsel %vm1922, %v480, %v738
      %v1926 = vsel %vm1922, %v481, %v740
      %v1928 = vsel %vm1922, %v482, %v742
      %v1930 = vsel %vm1922, %v483, %v744
      %v1932 = vsel %vm1922, %v484, %v746
      %v1934 = vsel %vm1922, %v485, %v748
      %v1936 = vsel %vm1922, %v486, %v750
      %v1938 = vsel %vm1922, %v487, %v752
      %v1940 = vsel %vm1922, %v488, %v754
      %v1942 = vsel %vm1922, %v489, %v756
      %v1944 = vsel %vm1922, %v490, %v758
      %v1946 = vsel %vm1922, %v491, %v760
      %v1948 = vsel %vm1922, %v492, %v762
      %v1950 = vsel %vm1922, %v493, %v764
      %v1952 = vsel %vm1922, %v494, %v766
      %v1954 = vsel %vm1922, %v495, %v768
      %vm1955 = vcmask 64512
      %v1957 = vsel %vm1955, %v1924, %v867
      %v1959 = vsel %vm1955, %v1926, %v869
      %v1961 = vsel %vm1955, %v1928, %v871
      %v1963 = vsel %vm1955, %v1930, %v873
      %v1965 = vsel %vm1955, %v1932, %v875
      %v1967 = vsel %vm1955, %v1934, %v877
      %v1969 = vsel %vm1955, %v1936, %v879
      %v1971 = vsel %vm1955, %v1938, %v881
      %v1973 = vsel %vm1955, %v1940, %v883
      %v1975 = vsel %vm1955, %v1942, %v885
      %v1977 = vsel %vm1955, %v1944, %v887
      %v1979 = vsel %vm1955, %v1946, %v889
      %v1981 = vsel %vm1955, %v1948, %v891
      %v1983 = vsel %vm1955, %v1950, %v893
      %v1985 = vsel %vm1955, %v1952, %v895
      %v1987 = vsel %vm1955, %v1954, %v897
      %vm1988 = vcmask 97280
      %v1990 = vsel %vm1988, %v1957, %v979
      %v1992 = vsel %vm1988, %v1959, %v981
      %v1994 = vsel %vm1988, %v1961, %v983
      %v1996 = vsel %vm1988, %v1963, %v985
      %v1998 = vsel %vm1988, %v1965, %v987
      %v2000 = vsel %vm1988, %v1967, %v989
      %v2002 = vsel %vm1988, %v1969, %v991
      %v2004 = vsel %vm1988, %v1971, %v993
      %v2006 = vsel %vm1988, %v1973, %v995
      %v2008 = vsel %vm1988, %v1975, %v997
      %v2010 = vsel %vm1988, %v1977, %v999
      %v2012 = vsel %vm1988, %v1979, %v1001
      %v2014 = vsel %vm1988, %v1981, %v1003
      %v2016 = vsel %vm1988, %v1983, %v1005
      %v2018 = vsel %vm1988, %v1985, %v1007
      %v2020 = vsel %vm1988, %v1987, %v1009
      %vm2021 = vcmask 130048
      %v2023 = vsel %vm2021, %v1990, %v1251
      %v2025 = vsel %vm2021, %v1992, %v1253
      %v2027 = vsel %vm2021, %v1994, %v1255
      %v2029 = vsel %vm2021, %v1996, %v1257
      %v2031 = vsel %vm2021, %v1998, %v1259
      %v2033 = vsel %vm2021, %v2000, %v1261
      %v2035 = vsel %vm2021, %v2002, %v1263
      %v2037 = vsel %vm2021, %v2004, %v1265
      %v2039 = vsel %vm2021, %v2006, %v1267
      %v2041 = vsel %vm2021, %v2008, %v1269
      %v2043 = vsel %vm2021, %v2010, %v1271
      %v2045 = vsel %vm2021, %v2012, %v1273
      %v2047 = vsel %vm2021, %v2014, %v1275
      %v2049 = vsel %vm2021, %v2016, %v1277
      %v2051 = vsel %vm2021, %v2018, %v1279
      %v2053 = vsel %vm2021, %v2020, %v1281
      %vm2054 = vcmask 162816
      %v2056 = vsel %vm2054, %v2023, %v1379
      %v2058 = vsel %vm2054, %v2025, %v1381
      %v2060 = vsel %vm2054, %v2027, %v1383
      %v2062 = vsel %vm2054, %v2029, %v1385
      %v2064 = vsel %vm2054, %v2031, %v1387
      %v2066 = vsel %vm2054, %v2033, %v1389
      %v2068 = vsel %vm2054, %v2035, %v1391
      %v2070 = vsel %vm2054, %v2037, %v1393
      %v2072 = vsel %vm2054, %v2039, %v1395
      %v2074 = vsel %vm2054, %v2041, %v1397
      %v2076 = vsel %vm2054, %v2043, %v1399
      %v2078 = vsel %vm2054, %v2045, %v1401
      %v2080 = vsel %vm2054, %v2047, %v1403
      %v2082 = vsel %vm2054, %v2049, %v1405
      %v2084 = vsel %vm2054, %v2051, %v1407
      %v2086 = vsel %vm2054, %v2053, %v1409
      %vm2087 = vcmask 195584
      %v2089 = vsel %vm2087, %v2056, %v1491
      %v2091 = vsel %vm2087, %v2058, %v1493
      %v2093 = vsel %vm2087, %v2060, %v1495
      %v2095 = vsel %vm2087, %v2062, %v1497
      %v2097 = vsel %vm2087, %v2064, %v1499
      %v2099 = vsel %vm2087, %v2066, %v1501
      %v2101 = vsel %vm2087, %v2068, %v1503
      %v2103 = vsel %vm2087, %v2070, %v1505
      %v2105 = vsel %vm2087, %v2072, %v1507
      %v2107 = vsel %vm2087, %v2074, %v1509
      %v2109 = vsel %vm2087, %v2076, %v1511
      %v2111 = vsel %vm2087, %v2078, %v1513
      %v2113 = vsel %vm2087, %v2080, %v1515
      %v2115 = vsel %vm2087, %v2082, %v1517
      %v2117 = vsel %vm2087, %v2084, %v1519
      %v2119 = vsel %vm2087, %v2086, %v1521
      %vm2120 = vcmask 228352
      %v2122 = vsel %vm2120, %v2089, %v1763
      %v2124 = vsel %vm2120, %v2091, %v1765
      %v2126 = vsel %vm2120, %v2093, %v1767
      %v2128 = vsel %vm2120, %v2095, %v1769
      %v2130 = vsel %vm2120, %v2097, %v1771
      %v2132 = vsel %vm2120, %v2099, %v1773
      %v2134 = vsel %vm2120, %v2101, %v1775
      %v2136 = vsel %vm2120, %v2103, %v1777
      %v2138 = vsel %vm2120, %v2105, %v1779
      %v2140 = vsel %vm2120, %v2107, %v1781
      %v2142 = vsel %vm2120, %v2109, %v1783
      %v2144 = vsel %vm2120, %v2111, %v1785
      %v2146 = vsel %vm2120, %v2113, %v1787
      %v2148 = vsel %vm2120, %v2115, %v1789
      %v2150 = vsel %vm2120, %v2117, %v1791
      %v2152 = vsel %vm2120, %v2119, %v1793
      %vm2153 = vcmask 261120
      %v2155 = vsel %vm2153, %v2122, %v1891
      %v2157 = vsel %vm2153, %v2124, %v1893
      %v2159 = vsel %vm2153, %v2126, %v1895
      %v2161 = vsel %vm2153, %v2128, %v1897
      %v2163 = vsel %vm2153, %v2130, %v1899
      %v2165 = vsel %vm2153, %v2132, %v1901
      %v2167 = vsel %vm2153, %v2134, %v1903
      %v2169 = vsel %vm2153, %v2136, %v1905
      %v2171 = vsel %vm2153, %v2138, %v1907
      %v2173 = vsel %vm2153, %v2140, %v1909
      %v2175 = vsel %vm2153, %v2142, %v1911
      %v2177 = vsel %vm2153, %v2144, %v1913
      %v2179 = vsel %vm2153, %v2146, %v1915
      %v2181 = vsel %vm2153, %v2148, %v1917
      %v2183 = vsel %vm2153, %v2150, %v1919
      %v2185 = vsel %vm2153, %v2152, %v1921
      %v2186 = vld [vmem:[%s1] sm:$0xf]
      %v2187 = vld [vmem:[%s1 + $0x4] sm:$0xf]
      %v2188 = vld [vmem:[%s1 + $0x8] sm:$0xf]
      %v2189 = vld [vmem:[%s1 + $0xc] sm:$0xf]
      %v2190 = vld [vmem:[%s1 + $0x10] sm:$0x3]
      %v2196 = vunpack.c.l.b16 %v2186
      %v2197 = vunpack.c.l.b16 %v2187
      %v2198 = vunpack.c.l.b16 %v2188
      %v2199 = vunpack.c.l.b16 %v2189
      %v2200 = vunpack.c.l.b16 %v2190
      %v2201 = vpack.c.b16 %v2197, %v2196
      %v2202 = vpack.c.b16 %v2199, %v2198
      %v2203 = vpack.c.b16 %v2200, %v2200
      %vm2206 = vcmask 293888
      %v2207 = vsel %vm2206, %v2155, 0
      %v2209 = vsel %vm2206, %v2157, 0
      %v2211 = vsel %vm2206, %v2159, 0
      %v2213 = vsel %vm2206, %v2161, 0
      %v2215 = vsel %vm2206, %v2163, 0
      %v2217 = vsel %vm2206, %v2165, 0
      %v2219 = vsel %vm2206, %v2167, 0
      %v2221 = vsel %vm2206, %v2169, 0
      %v2223 = vsel %vm2206, %v2171, 0
      %v2225 = vsel %vm2206, %v2173, 0
      %v2227 = vsel %vm2206, %v2175, 0
      %v2229 = vsel %vm2206, %v2177, 0
      %v2231 = vsel %vm2206, %v2179, 0
      %v2233 = vsel %vm2206, %v2181, 0
      %v2235 = vsel %vm2206, %v2183, 0
      %v2237 = vsel %vm2206, %v2185, 0
      %vm2239 = vcmask 1041408
      %v2241 = vsel %vm2239, %v2203, 0
      %2243 = vmatpush.bf16.msra.mxu0 0
      %2244 = vmatpush.bf16.msra.mxu0 0
      %2245 = vmatpush.bf16.msra.mxu0 0
      %2246 = vmatpush.bf16.msra.mxu0 0
      %2247 = vmatpush.bf16.msra.mxu0 0
      %2248 = vmatpush.bf16.msra.mxu0 %v2241
      %2249 = vmatpush.bf16.msra.mxu0 %v2202
      %2250 = vmatpush.bf16.msra.mxu0 %v2201
      %2251 = vmatmul.bf16.gmra.mxu0 %v2207
      %v2252 = vpop.f32.mrf.mxu0
      %v2253 = vadd.f32 0.0, %v2252
      %v2254 = vpop.f32.mrf.mxu0
      %v2255 = vadd.f32 0.0, %v2254
      %2256 = vmatmul.bf16.gmra.mxu0 %v2209
      %v2257 = vpop.f32.mrf.mxu0
      %v2258 = vadd.f32 0.0, %v2257
      %v2259 = vpop.f32.mrf.mxu0
      %v2260 = vadd.f32 0.0, %v2259
      %2261 = vmatmul.bf16.gmra.mxu0 %v2211
      %v2262 = vpop.f32.mrf.mxu0
      %v2263 = vadd.f32 0.0, %v2262
      %v2264 = vpop.f32.mrf.mxu0
      %v2265 = vadd.f32 0.0, %v2264
      %2266 = vmatmul.bf16.gmra.mxu0 %v2213
      %v2267 = vpop.f32.mrf.mxu0
      %v2268 = vadd.f32 0.0, %v2267
      %v2269 = vpop.f32.mrf.mxu0
      %v2270 = vadd.f32 0.0, %v2269
      %2271 = vmatmul.bf16.gmra.mxu0 %v2215
      %v2272 = vpop.f32.mrf.mxu0
      %v2273 = vadd.f32 0.0, %v2272
      %v2274 = vpop.f32.mrf.mxu0
      %v2275 = vadd.f32 0.0, %v2274
      %2276 = vmatmul.bf16.gmra.mxu0 %v2217
      %v2277 = vpop.f32.mrf.mxu0
      %v2278 = vadd.f32 0.0, %v2277
      %v2279 = vpop.f32.mrf.mxu0
      %v2280 = vadd.f32 0.0, %v2279
      %2281 = vmatmul.bf16.gmra.mxu0 %v2219
      %v2282 = vpop.f32.mrf.mxu0
      %v2283 = vadd.f32 0.0, %v2282
      %v2284 = vpop.f32.mrf.mxu0
      %v2285 = vadd.f32 0.0, %v2284
      %2286 = vmatmul.bf16.gmra.mxu0 %v2221
      %v2287 = vpop.f32.mrf.mxu0
      %v2288 = vadd.f32 0.0, %v2287
      %v2289 = vpop.f32.mrf.mxu0
      %v2290 = vadd.f32 0.0, %v2289
      %2291 = vmatmul.bf16.gmra.mxu0 %v2223
      %v2292 = vpop.f32.mrf.mxu0
      %v2293 = vadd.f32 0.0, %v2292
      %v2294 = vpop.f32.mrf.mxu0
      %v2295 = vadd.f32 0.0, %v2294
      %2296 = vmatmul.bf16.gmra.mxu0 %v2225
      %v2297 = vpop.f32.mrf.mxu0
      %v2298 = vadd.f32 0.0, %v2297
      %v2299 = vpop.f32.mrf.mxu0
      %v2300 = vadd.f32 0.0, %v2299
      %2301 = vmatmul.bf16.gmra.mxu0 %v2227
      %v2302 = vpop.f32.mrf.mxu0
      %v2303 = vadd.f32 0.0, %v2302
      %v2304 = vpop.f32.mrf.mxu0
      %v2305 = vadd.f32 0.0, %v2304
      %2306 = vmatmul.bf16.gmra.mxu0 %v2229
      %v2307 = vpop.f32.mrf.mxu0
      %v2308 = vadd.f32 0.0, %v2307
      %v2309 = vpop.f32.mrf.mxu0
      %v2310 = vadd.f32 0.0, %v2309
      %2311 = vmatmul.bf16.gmra.mxu0 %v2231
      %v2312 = vpop.f32.mrf.mxu0
      %v2313 = vadd.f32 0.0, %v2312
      %v2314 = vpop.f32.mrf.mxu0
      %v2315 = vadd.f32 0.0, %v2314
      %2316 = vmatmul.bf16.gmra.mxu0 %v2233
      %v2317 = vpop.f32.mrf.mxu0
      %v2318 = vadd.f32 0.0, %v2317
      %v2319 = vpop.f32.mrf.mxu0
      %v2320 = vadd.f32 0.0, %v2319
      %2321 = vmatmul.bf16.gmra.mxu0 %v2235
      %v2322 = vpop.f32.mrf.mxu0
      %v2323 = vadd.f32 0.0, %v2322
      %v2324 = vpop.f32.mrf.mxu0
      %v2325 = vadd.f32 0.0, %v2324
      %2326 = vmatmul.bf16.gmra.mxu0 %v2237
      %v2327 = vpop.f32.mrf.mxu0
      %v2328 = vadd.f32 0.0, %v2327
      %v2329 = vpop.f32.mrf.mxu0
      %v2330 = vadd.f32 0.0, %v2329
      %2331 = vdwg.mxu0
      %v2332 = vpack.c.bf16 %v2253, %v2253
      %v2333 = vpack.c.bf16 %v2255, %v2255
      %v2334 = vpack.c.bf16 %v2258, %v2258
      %v2335 = vpack.c.bf16 %v2260, %v2260
      %v2336 = vpack.c.bf16 %v2263, %v2263
      %v2337 = vpack.c.bf16 %v2265, %v2265
      %v2338 = vpack.c.bf16 %v2268, %v2268
      %v2339 = vpack.c.bf16 %v2270, %v2270
      %v2340 = vpack.c.bf16 %v2273, %v2273
      %v2341 = vpack.c.bf16 %v2275, %v2275
      %v2342 = vpack.c.bf16 %v2278, %v2278
      %v2343 = vpack.c.bf16 %v2280, %v2280
      %v2344 = vpack.c.bf16 %v2283, %v2283
      %v2345 = vpack.c.bf16 %v2285, %v2285
      %v2346 = vpack.c.bf16 %v2288, %v2288
      %v2347 = vpack.c.bf16 %v2290, %v2290
      %v2348 = vpack.c.bf16 %v2293, %v2293
      %v2349 = vpack.c.bf16 %v2295, %v2295
      %v2350 = vpack.c.bf16 %v2298, %v2298
      %v2351 = vpack.c.bf16 %v2300, %v2300
      %v2352 = vpack.c.bf16 %v2303, %v2303
      %v2353 = vpack.c.bf16 %v2305, %v2305
      %v2354 = vpack.c.bf16 %v2308, %v2308
      %v2355 = vpack.c.bf16 %v2310, %v2310
      %v2356 = vpack.c.bf16 %v2313, %v2313
      %v2357 = vpack.c.bf16 %v2315, %v2315
      %v2358 = vpack.c.bf16 %v2318, %v2318
      %v2359 = vpack.c.bf16 %v2320, %v2320
      %v2360 = vpack.c.bf16 %v2323, %v2323
      %v2361 = vpack.c.bf16 %v2325, %v2325
      %v2362 = vpack.c.bf16 %v2328, %v2328
      %v2363 = vpack.c.bf16 %v2330, %v2330
      %vm2364 = vcmask 257024
      %2365 = vst.msk [vmem:[%s203] sm:$0xf] %vm2364, %v2332
      %2366 = vst.msk [vmem:[%s203 + $0x4] sm:$0xf] %vm2364, %v2333
      %2367 = vst.msk [vmem:[%s203 + $0x8] sm:$0xf] %vm2364, %v2334
      %2368 = vst.msk [vmem:[%s203 + $0xc] sm:$0xf] %vm2364, %v2335
      %2369 = vst.msk [vmem:[%s203 + $0x10] sm:$0xf] %vm2364, %v2336
      %2370 = vst.msk [vmem:[%s203 + $0x14] sm:$0xf] %vm2364, %v2337
      %2371 = vst.msk [vmem:[%s203 + $0x18] sm:$0xf] %vm2364, %v2338
      %2372 = vst.msk [vmem:[%s203 + $0x1c] sm:$0xf] %vm2364, %v2339
      %2373 = vst.msk [vmem:[%s203 + $0x20] sm:$0xf] %vm2364, %v2340
      %2374 = vst.msk [vmem:[%s203 + $0x24] sm:$0xf] %vm2364, %v2341
      %2375 = vst.msk [vmem:[%s203 + $0x28] sm:$0xf] %vm2364, %v2342
      %2376 = vst.msk [vmem:[%s203 + $0x2c] sm:$0xf] %vm2364, %v2343
      %2377 = vst.msk [vmem:[%s203 + $0x30] sm:$0xf] %vm2364, %v2344
      %2378 = vst.msk [vmem:[%s203 + $0x34] sm:$0xf] %vm2364, %v2345
      %2379 = vst.msk [vmem:[%s203 + $0x38] sm:$0xf] %vm2364, %v2346
      %2380 = vst.msk [vmem:[%s203 + $0x3c] sm:$0xf] %vm2364, %v2347
      %2381 = vst.msk [vmem:[%s203 + $0x40] sm:$0xf] %vm2364, %v2348
      %2382 = vst.msk [vmem:[%s203 + $0x44] sm:$0xf] %vm2364, %v2349
      %2383 = vst.msk [vmem:[%s203 + $0x48] sm:$0xf] %vm2364, %v2350
      %2384 = vst.msk [vmem:[%s203 + $0x4c] sm:$0xf] %vm2364, %v2351
      %2385 = vst.msk [vmem:[%s203 + $0x50] sm:$0xf] %vm2364, %v2352
      %2386 = vst.msk [vmem:[%s203 + $0x54] sm:$0xf] %vm2364, %v2353
      %2387 = vst.msk [vmem:[%s203 + $0x58] sm:$0xf] %vm2364, %v2354
      %2388 = vst.msk [vmem:[%s203 + $0x5c] sm:$0xf] %vm2364, %v2355
      %2389 = vst.msk [vmem:[%s203 + $0x60] sm:$0xf] %vm2364, %v2356
      %2390 = vst.msk [vmem:[%s203 + $0x64] sm:$0xf] %vm2364, %v2357
      %2391 = vst.msk [vmem:[%s203 + $0x68] sm:$0xf] %vm2364, %v2358
      %2392 = vst.msk [vmem:[%s203 + $0x6c] sm:$0xf] %vm2364, %v2359
      %2393 = vst.msk [vmem:[%s203 + $0x70] sm:$0xf] %vm2364, %v2360
      %2394 = vst.msk [vmem:[%s203 + $0x74] sm:$0xf] %vm2364, %v2361
      %2395 = vst.msk [vmem:[%s203 + $0x78] sm:$0xf] %vm2364, %v2362
      %2396 = vst.msk [vmem:[%s203 + $0x7c] sm:$0xf] %vm2364, %v2363
      %v2397 = vsel %vm2153, %v2253, 0.0
      %v2398 = vsel %vm2153, %v2255, 0.0
      %v2399 = vadd.f32 %v2397, %v2398
      %v2400 = vsel %vm2153, %v2258, 0.0
      %v2401 = vadd.f32 %v2399, %v2400
      %v2402 = vsel %vm2153, %v2260, 0.0
      %v2403 = vadd.f32 %v2401, %v2402
      %v2404 = vsel %vm2153, %v2263, 0.0
      %v2405 = vadd.f32 %v2403, %v2404
      %v2406 = vsel %vm2153, %v2265, 0.0
      %v2407 = vadd.f32 %v2405, %v2406
      %v2408 = vsel %vm2153, %v2268, 0.0
      %v2409 = vadd.f32 %v2407, %v2408
      %v2410 = vsel %vm2153, %v2270, 0.0
      %v2411 = vadd.f32 %v2409, %v2410
      %v2412 = vsel %vm2153, %v2273, 0.0
      %v2413 = vadd.f32 %v2411, %v2412
      %v2414 = vsel %vm2153, %v2275, 0.0
      %v2415 = vadd.f32 %v2413, %v2414
      %v2416 = vsel %vm2153, %v2278, 0.0
      %v2417 = vadd.f32 %v2415, %v2416
      %v2418 = vsel %vm2153, %v2280, 0.0
      %v2419 = vadd.f32 %v2417, %v2418
      %v2420 = vsel %vm2153, %v2283, 0.0
      %v2421 = vadd.f32 %v2419, %v2420
      %v2422 = vsel %vm2153, %v2285, 0.0
      %v2423 = vadd.f32 %v2421, %v2422
      %v2424 = vsel %vm2153, %v2288, 0.0
      %v2425 = vadd.f32 %v2423, %v2424
      %v2426 = vsel %vm2153, %v2290, 0.0
      %v2427 = vadd.f32 %v2425, %v2426
      %v2428 = vsel %vm2153, %v2293, 0.0
      %v2429 = vadd.f32 %v2427, %v2428
      %v2430 = vsel %vm2153, %v2295, 0.0
      %v2431 = vadd.f32 %v2429, %v2430
      %v2432 = vsel %vm2153, %v2298, 0.0
      %v2433 = vadd.f32 %v2431, %v2432
      %v2434 = vsel %vm2153, %v2300, 0.0
      %v2435 = vadd.f32 %v2433, %v2434
      %v2436 = vsel %vm2153, %v2303, 0.0
      %v2437 = vadd.f32 %v2435, %v2436
      %v2438 = vsel %vm2153, %v2305, 0.0
      %v2439 = vadd.f32 %v2437, %v2438
      %v2440 = vsel %vm2153, %v2308, 0.0
      %v2441 = vadd.f32 %v2439, %v2440
      %v2442 = vsel %vm2153, %v2310, 0.0
      %v2443 = vadd.f32 %v2441, %v2442
      %v2444 = vsel %vm2153, %v2313, 0.0
      %v2445 = vadd.f32 %v2443, %v2444
      %v2446 = vsel %vm2153, %v2315, 0.0
      %v2447 = vadd.f32 %v2445, %v2446
      %v2448 = vsel %vm2153, %v2318, 0.0
      %v2449 = vadd.f32 %v2447, %v2448
      %v2450 = vsel %vm2153, %v2320, 0.0
      %v2451 = vadd.f32 %v2449, %v2450
      %v2452 = vsel %vm2153, %v2323, 0.0
      %v2453 = vadd.f32 %v2451, %v2452
      %v2454 = vsel %vm2153, %v2325, 0.0
      %v2455 = vadd.f32 %v2453, %v2454
      %v2456 = vsel %vm2153, %v2328, 0.0
      %v2457 = vadd.f32 %v2455, %v2456
      %v2458 = vsel %vm2153, %v2330, 0.0
      %v2459 = vadd.f32 %v2457, %v2458
      %v2460 = vrot.slane %v2459, 4
      %v2461 = vadd.f32 %v2459, %v2460
      %v2462 = vrot.slane %v2461, 2
      %v2463 = vadd.f32 %v2461, %v2462
      %v2464 = vrot.slane %v2463, 1
      %v2465 = vadd.f32 %v2463, %v2464
      %v2466 = vmul.f32 %v2253, %v2253
      %v2467 = vmul.f32 %v2255, %v2255
      %v2468 = vmul.f32 %v2258, %v2258
      %v2469 = vmul.f32 %v2260, %v2260
      %v2470 = vmul.f32 %v2263, %v2263
      %v2471 = vmul.f32 %v2265, %v2265
      %v2472 = vmul.f32 %v2268, %v2268
      %v2473 = vmul.f32 %v2270, %v2270
      %v2474 = vmul.f32 %v2273, %v2273
      %v2475 = vmul.f32 %v2275, %v2275
      %v2476 = vmul.f32 %v2278, %v2278
      %v2477 = vmul.f32 %v2280, %v2280
      %v2478 = vmul.f32 %v2283, %v2283
      %v2479 = vmul.f32 %v2285, %v2285
      %v2480 = vmul.f32 %v2288, %v2288
      %v2481 = vmul.f32 %v2290, %v2290
      %v2482 = vmul.f32 %v2293, %v2293
      %v2483 = vmul.f32 %v2295, %v2295
      %v2484 = vmul.f32 %v2298, %v2298
      %v2485 = vmul.f32 %v2300, %v2300
      %v2486 = vmul.f32 %v2303, %v2303
      %v2487 = vmul.f32 %v2305, %v2305
      %v2488 = vmul.f32 %v2308, %v2308
      %v2489 = vmul.f32 %v2310, %v2310
      %v2490 = vmul.f32 %v2313, %v2313
      %v2491 = vmul.f32 %v2315, %v2315
      %v2492 = vmul.f32 %v2318, %v2318
      %v2493 = vmul.f32 %v2320, %v2320
      %v2494 = vmul.f32 %v2323, %v2323
      %v2495 = vmul.f32 %v2325, %v2325
      %v2496 = vmul.f32 %v2328, %v2328
      %v2497 = vmul.f32 %v2330, %v2330
      %v2498 = vsel %vm2153, %v2466, 0.0
      %v2499 = vsel %vm2153, %v2467, 0.0
      %v2500 = vadd.f32 %v2498, %v2499
      %v2501 = vsel %vm2153, %v2468, 0.0
      %v2502 = vadd.f32 %v2500, %v2501
      %v2503 = vsel %vm2153, %v2469, 0.0
      %v2504 = vadd.f32 %v2502, %v2503
      %v2505 = vsel %vm2153, %v2470, 0.0
      %v2506 = vadd.f32 %v2504, %v2505
      %v2507 = vsel %vm2153, %v2471, 0.0
      %v2508 = vadd.f32 %v2506, %v2507
      %v2509 = vsel %vm2153, %v2472, 0.0
      %v2510 = vadd.f32 %v2508, %v2509
      %v2511 = vsel %vm2153, %v2473, 0.0
      %v2512 = vadd.f32 %v2510, %v2511
      %v2513 = vsel %vm2153, %v2474, 0.0
      %v2514 = vadd.f32 %v2512, %v2513
      %v2515 = vsel %vm2153, %v2475, 0.0
      %v2516 = vadd.f32 %v2514, %v2515
      %v2517 = vsel %vm2153, %v2476, 0.0
      %v2518 = vadd.f32 %v2516, %v2517
      %v2519 = vsel %vm2153, %v2477, 0.0
      %v2520 = vadd.f32 %v2518, %v2519
      %v2521 = vsel %vm2153, %v2478, 0.0
      %v2522 = vadd.f32 %v2520, %v2521
      %v2523 = vsel %vm2153, %v2479, 0.0
      %v2524 = vadd.f32 %v2522, %v2523
      %v2525 = vsel %vm2153, %v2480, 0.0
      %v2526 = vadd.f32 %v2524, %v2525
      %v2527 = vsel %vm2153, %v2481, 0.0
      %v2528 = vadd.f32 %v2526, %v2527
      %v2529 = vsel %vm2153, %v2482, 0.0
      %v2530 = vadd.f32 %v2528, %v2529
      %v2531 = vsel %vm2153, %v2483, 0.0
      %v2532 = vadd.f32 %v2530, %v2531
      %v2533 = vsel %vm2153, %v2484, 0.0
      %v2534 = vadd.f32 %v2532, %v2533
      %v2535 = vsel %vm2153, %v2485, 0.0
      %v2536 = vadd.f32 %v2534, %v2535
      %v2537 = vsel %vm2153, %v2486, 0.0
      %v2538 = vadd.f32 %v2536, %v2537
      %v2539 = vsel %vm2153, %v2487, 0.0
      %v2540 = vadd.f32 %v2538, %v2539
      %v2541 = vsel %vm2153, %v2488, 0.0
      %v2542 = vadd.f32 %v2540, %v2541
      %v2543 = vsel %vm2153, %v2489, 0.0
      %v2544 = vadd.f32 %v2542, %v2543
      %v2545 = vsel %vm2153, %v2490, 0.0
      %v2546 = vadd.f32 %v2544, %v2545
      %v2547 = vsel %vm2153, %v2491, 0.0
      %v2548 = vadd.f32 %v2546, %v2547
      %v2549 = vsel %vm2153, %v2492, 0.0
      %v2550 = vadd.f32 %v2548, %v2549
      %v2551 = vsel %vm2153, %v2493, 0.0
      %v2552 = vadd.f32 %v2550, %v2551
      %v2553 = vsel %vm2153, %v2494, 0.0
      %v2554 = vadd.f32 %v2552, %v2553
      %v2555 = vsel %vm2153, %v2495, 0.0
      %v2556 = vadd.f32 %v2554, %v2555
      %v2557 = vsel %vm2153, %v2496, 0.0
      %v2558 = vadd.f32 %v2556, %v2557
      %v2559 = vsel %vm2153, %v2497, 0.0
      %v2560 = vadd.f32 %v2558, %v2559
      %v2561 = vrot.slane %v2560, 4
      %v2562 = vadd.f32 %v2560, %v2561
      %v2563 = vrot.slane %v2562, 2
      %v2564 = vadd.f32 %v2562, %v2563
      %v2565 = vrot.slane %v2564, 1
      %v2566 = vadd.f32 %v2564, %v2565
      %2568 = vrot.lane.b32.xlu0 %v2566, 32
      %v2569 = vpop.permute.xlu0 %2568
      %v2571 = vsel %vm2153, %v2465, %v2569
      %vm2572 = vcmask 516096
      %2573 = vst.msk [vmem:[%s210] sm:$0x1] %vm2572, %v2571
      %s2574 = smul.u32 32, %s20
      %p2575 = scmp.lt.s32.totalorder %s19, 1
      %s2576 = scalar_select %p2575, %s19, 1
      %p2577 = scmp.lt.s32.totalorder %s2574, 31
      %s2578 = scalar_select %p2577, %s2574, 31
      %s2579 = smul.addr %s2576, 32
      %s2580 = sadd.s32 %s2578, %s2579
      %s2581 = smul.addr %s2580, 4
      %s2582 = scalar_lea.vmem %s2, %s2581
      %p2583 = scmp.lt.s32.totalorder %s19, 1
      %s2584 = scalar_select %p2583, %s19, 1
      %p2585 = scmp.lt.s32.totalorder %s20, 0
      %s2586 = scalar_select %p2585, %s20, 0
      %s2587 = sadd.s32 %s2586, %s2584
      %s2588 = scalar_lea.vmem %s3, %s2587
      // Predicated region
      $region29: #{conv_up_block.2} parent=27 // pred_check
        %p2589 = pneg %p94
      $region30: #{conv_up_block.2} parent=27 // pred_check_branch
        %2591 = sbr.rel (%p2589) target = $region32
      $region31: #{conv_up_block.2} parent=27 // pred_region
        %s2592 = smul.u32 32, %s20
      $region32: #{conv_up_block.2} parent=27 // pred_fallthru
        _
      // Predicated region
      $region33: #{conv_up_block.2} parent=27 // pred_check
        %p2593 = pneg %p122
      $region34: #{conv_up_block.2} parent=27 // pred_check_branch
        %2595 = sbr.rel (%p2593) target = $region36
      $region35: #{conv_up_block.2} parent=27 // pred_region
        _
      $region36: #{conv_up_block.2} parent=27 // pred_fallthru
        _
    $region28: #{conv_up_block.2} parent=5 // pred_fallthru
      _
    %p2596 = scmp.le.s32.totalorder 2, %s10
    // Predicated region
    $region37: #{conv_up_block.2} parent=5 // pred_check
      %p2597 = pneg %p2596
    $region38: #{conv_up_block.2} parent=5 // pred_check_branch
      %2599 = sbr.rel (%p2597) target = $region40
    $region39: #{conv_up_block.2} parent=5 // pred_region
      %s2600 = ssub.s32 %s10, 2
      // Predicated region
      $region41: #{conv_up_block.2} parent=39 // pred_check
        %p2601 = pneg %p100
      $region42: #{conv_up_block.2} parent=39 // pred_check_branch
        %2603 = sbr.rel (%p2601) target = $region44
      $region43: #{conv_up_block.2} parent=39 // pred_region
        %s2604 = smul.u32 32, %s22
        %p2605 = scmp.lt.s32.totalorder %s21, 1
        %s2606 = scalar_select %p2605, %s21, 1
        %p2607 = scmp.lt.s32.totalorder %s2604, 31
        %s2608 = scalar_select %p2607, %s2604, 31
        %s2609 = smul.addr %s2606, 32
        %s2610 = sadd.s32 %s2608, %s2609
        %s2611 = smul.addr %s2610, 4
        %s2612 = scalar_lea.vmem %s2, %s2611
      $region44: #{conv_up_block.2} parent=39 // pred_fallthru
        _
      // Predicated region
      $region45: #{conv_up_block.2} parent=39 // pred_check
        %p2613 = pneg %p128
      $region46: #{conv_up_block.2} parent=39 // pred_check_branch
        %2615 = sbr.rel (%p2613) target = $region48
      $region47: #{conv_up_block.2} parent=39 // pred_region
        %p2616 = scmp.lt.s32.totalorder %s21, 1
        %s2617 = scalar_select %p2616, %s21, 1
        %p2618 = scmp.lt.s32.totalorder %s22, 0
        %s2619 = scalar_select %p2618, %s22, 0
        %s2620 = sadd.s32 %s2619, %s2617
        %s2621 = scalar_lea.vmem %s3, %s2620
      $region48: #{conv_up_block.2} parent=39 // pred_fallthru
        _
    $region40: #{conv_up_block.2} parent=5 // pred_fallthru
      _
  $region6: #{conv_up_block.2} parent=0 // loop_footer
    %s14 = sadd.s32 1, %s10
  $region7: #{conv_up_block.2} parent=0 // loop_footer_branch
    %9 = sbr.rel target = $region3
  $region8: #{conv_up_block.2} parent=0 // loop_exit
    _

</llo_original>
